<compile_context>
chip_gen: v5e
topology: v5e:2x2
jax: 0.10.0
libtpu: 0.0.40
codegen_flags: <defaults>
</compile_context>

<pallas_src>
import functools

import jax
import jax.numpy as jnp
from jax.experimental import pallas as pl
from jax.experimental.pallas import tpu as pltpu


# ------------------------------- Pallas kernel ------------------------------ #

def _resblock_kernel(x_ref,
                     w1_ref, b1_ref, g1_ref, be1_ref,
                     w2_ref, b2_ref, g2_ref, be2_ref,
                     w3_ref, b3_ref, g3_ref, be3_ref,
                     o_ref, *, eps, compute_dtype):
    # x_ref: (B, Cin, L) NCL input.  w*_ref: (3, Cout, Cin) per-tap weights.
    # b/g/be refs: (Cout, 1) column vectors.  o_ref: (B, C, L) NCL output.
    # All compute uses (channels, B*L) tiles: channels on sublanes (24/48,
    # multiples of 8), batch*length on lanes (256, multiple of 128).
    B, _, L = x_ref.shape
    BL = B * L
    inv_n = 1.0 / BL

    # Lane-position masks for the k=3, padding=1 taps: zero the columns where
    # the shifted read would cross a batch boundary or the zero padding.
    pos = jax.lax.broadcasted_iota(jnp.int32, (1, BL), 1) % L
    has_prev = pos != 0            # x[l-1] exists
    has_next = pos != (L - 1)      # x[l+1] exists

    def conv_bn_relu(x, w_ref, b_ref, g_ref, be_ref):
        # x: (Cin, B*L) activations.
        xc = x.astype(compute_dtype)
        # k=3 tap shifts along lanes: XLU rotate + VPU select (no pad/concat).
        x_prev = jnp.where(has_prev, pltpu.roll(xc, 1, 1), 0.0)        # x[:, l-1]
        x_next = jnp.where(has_next, pltpu.roll(xc, BL - 1, 1), 0.0)   # x[:, l+1]
        # Conv1d(k=3, padding=1): 3 accumulating matmuls, f32 accumulation.
        h = jnp.dot(w_ref[1], xc, preferred_element_type=jnp.float32)
        h = h + jnp.dot(w_ref[0], x_prev, preferred_element_type=jnp.float32)
        h = h + jnp.dot(w_ref[2], x_next, preferred_element_type=jnp.float32)
        h = h + b_ref[...]         # conv bias (mathematically absorbed by BN)
        # One-pass BatchNorm1d training-mode stats over (batch, length) = lanes.
        s1 = jnp.sum(h, axis=1, keepdims=True)
        s2 = jnp.sum(h * h, axis=1, keepdims=True)
        mean = s1 * inv_n
        var = jnp.maximum(s2 * inv_n - mean * mean, 0.0)
        scale = g_ref[...] * jax.lax.rsqrt(var + eps)                  # EUP rsqrt
        shift = be_ref[...] - mean * scale
        return jnp.maximum(h * scale + shift, 0.0)                     # fused affine + ReLU

    # Fold batch into lanes once: (B, Cin, L) -> (Cin, B*L); 128-aligned concat.
    x0 = jnp.concatenate([x_ref[b] for b in range(B)], axis=-1)
    h = conv_bn_relu(x0, w1_ref, b1_ref, g1_ref, be1_ref)   # (C//2, B*L)
    h = conv_bn_relu(h, w2_ref, b2_ref, g2_ref, be2_ref)    # (C//2, B*L)
    h = conv_bn_relu(h, w3_ref, b3_ref, g3_ref, be3_ref)    # (C,    B*L)
    for b in range(B):   # lane-dense (C, L) stores; static, 128-aligned slices
        o_ref[b] = h[:, b * L:(b + 1) * L]
    # TODO(synk): PyTorch BatchNorm1d training mode also updates
    # running_mean/running_var; expose batch stats as extra outputs if needed.
    # TODO(synk): for large B*L, tile B*L over a "parallel" grid axis (v7x dual
    # TensorCore) with two-pass BN stats via a partial-sum accumulator.


# --------------------------------- wrapper ---------------------------------- #

def res_block(x_ncl, params, *, eps=1e-5, compute_dtype=jnp.float32):
    """ResBlock forward.  x_ncl: (B, C, L) PyTorch layout; returns (B, C, L).

    compute_dtype=jnp.bfloat16 is the recommended MXU-operand dtype on v6e/v7x
    (f32 accumulation kept); default f32 matches the f32 reference closely.
    """
    x = x_ncl.astype(jnp.float32)
    B, C, L = x.shape
    C2 = C // 2

    def taps(w):   # PyTorch (Cout, Cin, K=3) -> per-tap (K, Cout, Cin)
        return jnp.transpose(w, (2, 0, 1)).astype(compute_dtype)

    def col(v):    # (Cout,) -> (Cout, 1): channels on the sublane axis
        return v.reshape(-1, 1).astype(jnp.float32)

    ins = (x,
           taps(params["w1"]), col(params["b1"]), col(params["g1"]), col(params["be1"]),
           taps(params["w2"]), col(params["b2"]), col(params["g2"]), col(params["be2"]),
           taps(params["w3"]), col(params["b3"]), col(params["g3"]), col(params["be3"]))

    def full(a):
        nd = a.ndim
        def imap(i):
            return (0,) * nd
        return pl.BlockSpec(a.shape, imap)

    flops = 2 * B * L * 3 * (C * C2 + C2 * C2 + C2 * C)
    bytes_accessed = int(sum(int(a.size) * a.dtype.itemsize for a in ins)
                         + 4 * B * C * L)

    kernel = functools.partial(_resblock_kernel, eps=eps, compute_dtype=compute_dtype)
    return pl.pallas_call(
        kernel,
        out_shape=jax.ShapeDtypeStruct((B, C, L), jnp.float32),
        grid=(1,),
        in_specs=[full(a) for a in ins],
        out_specs=pl.BlockSpec((B, C, L), lambda i: (0, 0, 0)),
        compiler_params=pltpu.CompilerParams(dimension_semantics=("arbitrary",)),
        cost_estimate=pl.CostEstimate(flops=flops, transcendentals=2 * C2 + C,
                                      bytes_accessed=bytes_accessed),
    )(*ins)


# --------------------------- pure-JAX reference ----------------------------- #

def res_block_ref(x_ncl, params, eps=1e-5):
    def conv(x, w, b):
        y = jax.lax.conv_general_dilated(
            x, w, window_strides=(1,), padding=((1, 1),),
            dimension_numbers=("NCH", "OIH", "NCH"))
        return y + b[None, :, None]

    def bn_relu(x, g, be):
        mean = jnp.mean(x, axis=(0, 2), keepdims=True)
        var = jnp.mean(jnp.square(x - mean), axis=(0, 2), keepdims=True)
        y = (x - mean) / jnp.sqrt(var + eps)
        return jnp.maximum(y * g[None, :, None] + be[None, :, None], 0.0)

    x = bn_relu(conv(x_ncl, params["w1"], params["b1"]), params["g1"], params["be1"])
    x = bn_relu(conv(x, params["w2"], params["b2"]), params["g2"], params["be2"])
    x = bn_relu(conv(x, params["w3"], params["b3"]), params["g3"], params["be3"])
    return x


# ------------------------------ parameter init ------------------------------ #

def make_resblock_params(key, n_feats):
    c, c2 = n_feats, n_feats // 2
    ks = jax.random.split(key, 6)

    def conv_init(kw, kb, cin, cout, k=3):
        bound = 1.0 / (cin * k) ** 0.5
        w = jax.random.uniform(kw, (cout, cin, k), jnp.float32, -bound, bound)
        b = jax.random.uniform(kb, (cout,), jnp.float32, -bound, bound)
        return w, b

    p = {}
    p["w1"], p["b1"] = conv_init(ks[0], ks[1], c, c2)
    p["g1"], p["be1"] = jnp.ones((c2,), jnp.float32), jnp.zeros((c2,), jnp.float32)
    p["w2"], p["b2"] = conv_init(ks[2], ks[3], c2, c2)
    p["g2"], p["be2"] = jnp.ones((c2,), jnp.float32), jnp.zeros((c2,), jnp.float32)
    p["w3"], p["b3"] = conv_init(ks[4], ks[5], c2, c)
    p["g3"], p["be3"] = jnp.ones((c,), jnp.float32), jnp.zeros((c,), jnp.float32)
    return p


# ----------------------------------- main ------------------------------------ #

if __name__ == "__main__":
    n_feats, B, L = 48, 2, 128
    key = jax.random.PRNGKey(0)
    kx, kp = jax.random.split(key)
    x = jax.random.normal(kx, (B, n_feats, L), jnp.float32)   # PyTorch NCL input
    params = make_resblock_params(kp, n_feats)

    fwd = jax.jit(res_block)
    out = jax.block_until_ready(fwd(x, params))
    assert out.shape == (B, n_feats, L), out.shape
    assert bool(jnp.all(jnp.isfinite(out)))

    ref = res_block_ref(x, params)
    max_err = float(jnp.max(jnp.abs(out - ref)))
    assert max_err < 1e-3, f"max abs err vs reference: {max_err}"
    print("KERNEL_OK")
</pallas_src>

<mosaic_0001>
module attributes {stable_mosaic.version = 11 : i64} {
  func.func @_resblock_kernel(%arg0: i32, %arg1: memref<2x48x128xf32, #tpu.memory_space<vmem>>, %arg2: memref<3x24x48xf32, #tpu.memory_space<vmem>>, %arg3: memref<24x1xf32, #tpu.memory_space<vmem>>, %arg4: memref<24x1xf32, #tpu.memory_space<vmem>>, %arg5: memref<24x1xf32, #tpu.memory_space<vmem>>, %arg6: memref<3x24x24xf32, #tpu.memory_space<vmem>>, %arg7: memref<24x1xf32, #tpu.memory_space<vmem>>, %arg8: memref<24x1xf32, #tpu.memory_space<vmem>>, %arg9: memref<24x1xf32, #tpu.memory_space<vmem>>, %arg10: memref<3x48x24xf32, #tpu.memory_space<vmem>>, %arg11: memref<48x1xf32, #tpu.memory_space<vmem>>, %arg12: memref<48x1xf32, #tpu.memory_space<vmem>>, %arg13: memref<48x1xf32, #tpu.memory_space<vmem>>, %arg14: memref<2x48x128xf32, #tpu.memory_space<vmem>>) attributes {dimension_semantics = [#tpu.dimension_semantics<arbitrary>], iteration_bounds = array<i64: 1>, scalar_prefetch = 0 : i64, scratch_operands = 0 : i64, tpu.core_type = #tpu.core_type<tc>, window_params = [{pipeline_mode = #tpu.pipeline_mode<synchronous>, transform_indices = @transform_0, window_bounds = array<i64: 2, 48, 128>}, {pipeline_mode = #tpu.pipeline_mode<synchronous>, transform_indices = @transform_1, window_bounds = array<i64: 3, 24, 48>}, {pipeline_mode = #tpu.pipeline_mode<synchronous>, transform_indices = @transform_2, window_bounds = array<i64: 24, 1>}, {pipeline_mode = #tpu.pipeline_mode<synchronous>, transform_indices = @transform_3, window_bounds = array<i64: 24, 1>}, {pipeline_mode = #tpu.pipeline_mode<synchronous>, transform_indices = @transform_4, window_bounds = array<i64: 24, 1>}, {pipeline_mode = #tpu.pipeline_mode<synchronous>, transform_indices = @transform_5, window_bounds = array<i64: 3, 24, 24>}, {pipeline_mode = #tpu.pipeline_mode<synchronous>, transform_indices = @transform_6, window_bounds = array<i64: 24, 1>}, {pipeline_mode = #tpu.pipeline_mode<synchronous>, transform_indices = @transform_7, window_bounds = array<i64: 24, 1>}, {pipeline_mode = #tpu.pipeline_mode<synchronous>, transform_indices = @transform_8, window_bounds = array<i64: 24, 1>}, {pipeline_mode = #tpu.pipeline_mode<synchronous>, transform_indices = @transform_9, window_bounds = array<i64: 3, 48, 24>}, {pipeline_mode = #tpu.pipeline_mode<synchronous>, transform_indices = @transform_10, window_bounds = array<i64: 48, 1>}, {pipeline_mode = #tpu.pipeline_mode<synchronous>, transform_indices = @transform_11, window_bounds = array<i64: 48, 1>}, {pipeline_mode = #tpu.pipeline_mode<synchronous>, transform_indices = @transform_12, window_bounds = array<i64: 48, 1>}, {pipeline_mode = #tpu.pipeline_mode<synchronous>, transform_indices = @transform_13, window_bounds = array<i64: 2, 48, 128>}]} {
    %0 = tpu.iota {dimensions = array<i32: 1>} : vector<1x256xi32>
    %c128_i32 = arith.constant 128 : i32
    %c0_i32 = arith.constant 0 : i32
    %1 = arith.cmpi eq, %c128_i32, %c0_i32 : i32
    %c1_i32 = arith.constant 1 : i32
    %2 = arith.select %1, %c1_i32, %c128_i32 : i32
    %3 = vector.broadcast %2 : i32 to vector<1x256xi32>
    %4 = arith.remsi %0, %3 : vector<1x256xi32>
    %c0_i32_0 = arith.constant 0 : i32
    %5 = vector.broadcast %c0_i32_0 : i32 to vector<1x256xi32>
    %6 = arith.cmpi ne, %4, %5 : vector<1x256xi32>
    %c0_i32_1 = arith.constant 0 : i32
    %7 = vector.broadcast %c0_i32_1 : i32 to vector<1x256xi32>
    %8 = arith.cmpi slt, %4, %7 : vector<1x256xi32>
    %c0_i32_2 = arith.constant 0 : i32
    %9 = arith.cmpi slt, %2, %c0_i32_2 : i32
    %10 = vector.broadcast %9 : i1 to vector<1x256xi1>
    %11 = vector.broadcast %10 : vector<1x256xi1> to vector<1x256xi1>
    %12 = arith.xori %8, %11 : vector<1x256xi1>
    %13 = arith.andi %12, %6 : vector<1x256xi1>
    %14 = vector.broadcast %2 : i32 to vector<1x256xi32>
    %15 = arith.addi %4, %14 : vector<1x256xi32>
    %16 = arith.select %13, %15, %4 : vector<1x256xi1>, vector<1x256xi32>
    %c0_i32_3 = arith.constant 0 : i32
    %17 = vector.broadcast %c0_i32_3 : i32 to vector<1x256xi32>
    %18 = arith.cmpi ne, %16, %17 : vector<1x256xi32>
    %c127_i32 = arith.constant 127 : i32
    %19 = vector.broadcast %c127_i32 : i32 to vector<1x256xi32>
    %20 = arith.cmpi ne, %16, %19 : vector<1x256xi32>
    %c0 = arith.constant 0 : index
    %c0_4 = arith.constant 0 : index
    %c0_5 = arith.constant 0 : index
    %21 = vector.load %arg1[%c0, %c0_4, %c0_5] : memref<2x48x128xf32, #tpu.memory_space<vmem>>, vector<1x48x128xf32>
    %22 = vector.shape_cast %21 : vector<1x48x128xf32> to vector<48x128xf32>
    %c1 = arith.constant 1 : index
    %c0_6 = arith.constant 0 : index
    %c0_7 = arith.constant 0 : index
    %23 = vector.load %arg1[%c1, %c0_6, %c0_7] : memref<2x48x128xf32, #tpu.memory_space<vmem>>, vector<1x48x128xf32>
    %24 = vector.shape_cast %23 : vector<1x48x128xf32> to vector<48x128xf32>
    %25 = tpu.concatenate %22, %24 in 1 : vector<48x128xf32>, vector<48x128xf32> -> vector<48x256xf32>
    %c1_i32_8 = arith.constant 1 : i32
    %26 = tpu.dynamic_rotate %25 by %c1_i32_8 dim 1 : vector<48x256xf32>, i32 -> vector<48x256xf32>
    %cst = arith.constant 0.000000e+00 : f32
    %27 = vector.shape_cast %18 : vector<1x256xi1> to vector<1x256xi1>
    %28 = vector.broadcast %27 : vector<1x256xi1> to vector<48x256xi1>
    %29 = vector.broadcast %cst : f32 to vector<48x256xf32>
    %30 = arith.select %28, %26, %29 : vector<48x256xi1>, vector<48x256xf32>
    %c255_i32 = arith.constant 255 : i32
    %31 = tpu.dynamic_rotate %25 by %c255_i32 dim 1 : vector<48x256xf32>, i32 -> vector<48x256xf32>
    %cst_9 = arith.constant 0.000000e+00 : f32
    %32 = vector.shape_cast %20 : vector<1x256xi1> to vector<1x256xi1>
    %33 = vector.broadcast %32 : vector<1x256xi1> to vector<48x256xi1>
    %34 = vector.broadcast %cst_9 : f32 to vector<48x256xf32>
    %35 = arith.select %33, %31, %34 : vector<48x256xi1>, vector<48x256xf32>
    %c1_10 = arith.constant 1 : index
    %c0_11 = arith.constant 0 : index
    %c0_12 = arith.constant 0 : index
    %36 = vector.load %arg2[%c1_10, %c0_11, %c0_12] : memref<3x24x48xf32, #tpu.memory_space<vmem>>, vector<1x24x48xf32>
    %37 = vector.shape_cast %36 : vector<1x24x48xf32> to vector<24x48xf32>
    %cst_13 = arith.constant dense<0.000000e+00> : vector<24x256xf32>
    %38 = tpu.matmul %37, %25, %cst_13 {dimension_numbers = #tpu.dot_dimension_numbers<[1], [0], [0], [1], [0, 0, 1, 1], [], []>} : vector<24x48xf32>, vector<48x256xf32>, vector<24x256xf32> -> vector<24x256xf32>
    %c0_14 = arith.constant 0 : index
    %c0_15 = arith.constant 0 : index
    %c0_16 = arith.constant 0 : index
    %39 = vector.load %arg2[%c0_14, %c0_15, %c0_16] : memref<3x24x48xf32, #tpu.memory_space<vmem>>, vector<1x24x48xf32>
    %40 = vector.shape_cast %39 : vector<1x24x48xf32> to vector<24x48xf32>
    %cst_17 = arith.constant dense<0.000000e+00> : vector<24x256xf32>
    %41 = tpu.matmul %40, %30, %cst_17 {dimension_numbers = #tpu.dot_dimension_numbers<[1], [0], [0], [1], [0, 0, 1, 1], [], []>} : vector<24x48xf32>, vector<48x256xf32>, vector<24x256xf32> -> vector<24x256xf32>
    %42 = arith.addf %38, %41 : vector<24x256xf32>
    %c2 = arith.constant 2 : index
    %c0_18 = arith.constant 0 : index
    %c0_19 = arith.constant 0 : index
    %43 = vector.load %arg2[%c2, %c0_18, %c0_19] : memref<3x24x48xf32, #tpu.memory_space<vmem>>, vector<1x24x48xf32>
    %44 = vector.shape_cast %43 : vector<1x24x48xf32> to vector<24x48xf32>
    %cst_20 = arith.constant dense<0.000000e+00> : vector<24x256xf32>
    %45 = tpu.matmul %44, %35, %cst_20 {dimension_numbers = #tpu.dot_dimension_numbers<[1], [0], [0], [1], [0, 0, 1, 1], [], []>} : vector<24x48xf32>, vector<48x256xf32>, vector<24x256xf32> -> vector<24x256xf32>
    %46 = arith.addf %42, %45 : vector<24x256xf32>
    %c0_21 = arith.constant 0 : index
    %c0_22 = arith.constant 0 : index
    %47 = vector.load %arg3[%c0_21, %c0_22] : memref<24x1xf32, #tpu.memory_space<vmem>>, vector<24x1xf32>
    %48 = vector.broadcast %47 : vector<24x1xf32> to vector<24x256xf32>
    %49 = arith.addf %46, %48 : vector<24x256xf32>
    %cst_23 = arith.constant dense<0.000000e+00> : vector<24xf32>
    %50 = vector.multi_reduction <add>, %49, %cst_23 [1] : vector<24x256xf32> to vector<24xf32>
    %51 = vector.shape_cast %50 : vector<24xf32> to vector<24x1xf32>
    %52 = arith.mulf %49, %49 : vector<24x256xf32>
    %cst_24 = arith.constant dense<0.000000e+00> : vector<24xf32>
    %53 = vector.multi_reduction <add>, %52, %cst_24 [1] : vector<24x256xf32> to vector<24xf32>
    %54 = vector.shape_cast %53 : vector<24xf32> to vector<24x1xf32>
    %cst_25 = arith.constant 3.906250e-03 : f32
    %55 = vector.broadcast %cst_25 : f32 to vector<24x1xf32>
    %56 = arith.mulf %51, %55 : vector<24x1xf32>
    %cst_26 = arith.constant 3.906250e-03 : f32
    %57 = vector.broadcast %cst_26 : f32 to vector<24x1xf32>
    %58 = arith.mulf %54, %57 : vector<24x1xf32>
    %59 = arith.mulf %56, %56 : vector<24x1xf32>
    %60 = arith.subf %58, %59 : vector<24x1xf32>
    %cst_27 = arith.constant 0.000000e+00 : f32
    %61 = vector.broadcast %cst_27 : f32 to vector<24x1xf32>
    %62 = arith.maximumf %60, %61 : vector<24x1xf32>
    %c0_28 = arith.constant 0 : index
    %c0_29 = arith.constant 0 : index
    %63 = vector.load %arg4[%c0_28, %c0_29] : memref<24x1xf32, #tpu.memory_space<vmem>>, vector<24x1xf32>
    %cst_30 = arith.constant 9.99999974E-6 : f32
    %64 = vector.broadcast %cst_30 : f32 to vector<24x1xf32>
    %65 = arith.addf %62, %64 : vector<24x1xf32>
    %66 = math.rsqrt %65 : vector<24x1xf32>
    %67 = arith.mulf %63, %66 : vector<24x1xf32>
    %c0_31 = arith.constant 0 : index
    %c0_32 = arith.constant 0 : index
    %68 = vector.load %arg5[%c0_31, %c0_32] : memref<24x1xf32, #tpu.memory_space<vmem>>, vector<24x1xf32>
    %69 = arith.mulf %56, %67 : vector<24x1xf32>
    %70 = arith.subf %68, %69 : vector<24x1xf32>
    %71 = vector.broadcast %67 : vector<24x1xf32> to vector<24x256xf32>
    %72 = arith.mulf %49, %71 : vector<24x256xf32>
    %73 = vector.broadcast %70 : vector<24x1xf32> to vector<24x256xf32>
    %74 = arith.addf %72, %73 : vector<24x256xf32>
    %cst_33 = arith.constant 0.000000e+00 : f32
    %75 = vector.broadcast %cst_33 : f32 to vector<24x256xf32>
    %76 = arith.maximumf %74, %75 : vector<24x256xf32>
    %c1_i32_34 = arith.constant 1 : i32
    %77 = tpu.dynamic_rotate %76 by %c1_i32_34 dim 1 : vector<24x256xf32>, i32 -> vector<24x256xf32>
    %cst_35 = arith.constant 0.000000e+00 : f32
    %78 = vector.shape_cast %18 : vector<1x256xi1> to vector<1x256xi1>
    %79 = vector.broadcast %78 : vector<1x256xi1> to vector<24x256xi1>
    %80 = vector.broadcast %cst_35 : f32 to vector<24x256xf32>
    %81 = arith.select %79, %77, %80 : vector<24x256xi1>, vector<24x256xf32>
    %c255_i32_36 = arith.constant 255 : i32
    %82 = tpu.dynamic_rotate %76 by %c255_i32_36 dim 1 : vector<24x256xf32>, i32 -> vector<24x256xf32>
    %cst_37 = arith.constant 0.000000e+00 : f32
    %83 = vector.shape_cast %20 : vector<1x256xi1> to vector<1x256xi1>
    %84 = vector.broadcast %83 : vector<1x256xi1> to vector<24x256xi1>
    %85 = vector.broadcast %cst_37 : f32 to vector<24x256xf32>
    %86 = arith.select %84, %82, %85 : vector<24x256xi1>, vector<24x256xf32>
    %c1_38 = arith.constant 1 : index
    %c0_39 = arith.constant 0 : index
    %c0_40 = arith.constant 0 : index
    %87 = vector.load %arg6[%c1_38, %c0_39, %c0_40] : memref<3x24x24xf32, #tpu.memory_space<vmem>>, vector<1x24x24xf32>
    %88 = vector.shape_cast %87 : vector<1x24x24xf32> to vector<24x24xf32>
    %cst_41 = arith.constant dense<0.000000e+00> : vector<24x256xf32>
    %89 = tpu.matmul %88, %76, %cst_41 {dimension_numbers = #tpu.dot_dimension_numbers<[1], [0], [0], [1], [0, 0, 1, 1], [], []>} : vector<24x24xf32>, vector<24x256xf32>, vector<24x256xf32> -> vector<24x256xf32>
    %c0_42 = arith.constant 0 : index
    %c0_43 = arith.constant 0 : index
    %c0_44 = arith.constant 0 : index
    %90 = vector.load %arg6[%c0_42, %c0_43, %c0_44] : memref<3x24x24xf32, #tpu.memory_space<vmem>>, vector<1x24x24xf32>
    %91 = vector.shape_cast %90 : vector<1x24x24xf32> to vector<24x24xf32>
    %cst_45 = arith.constant dense<0.000000e+00> : vector<24x256xf32>
    %92 = tpu.matmul %91, %81, %cst_45 {dimension_numbers = #tpu.dot_dimension_numbers<[1], [0], [0], [1], [0, 0, 1, 1], [], []>} : vector<24x24xf32>, vector<24x256xf32>, vector<24x256xf32> -> vector<24x256xf32>
    %93 = arith.addf %89, %92 : vector<24x256xf32>
    %c2_46 = arith.constant 2 : index
    %c0_47 = arith.constant 0 : index
    %c0_48 = arith.constant 0 : index
    %94 = vector.load %arg6[%c2_46, %c0_47, %c0_48] : memref<3x24x24xf32, #tpu.memory_space<vmem>>, vector<1x24x24xf32>
    %95 = vector.shape_cast %94 : vector<1x24x24xf32> to vector<24x24xf32>
    %cst_49 = arith.constant dense<0.000000e+00> : vector<24x256xf32>
    %96 = tpu.matmul %95, %86, %cst_49 {dimension_numbers = #tpu.dot_dimension_numbers<[1], [0], [0], [1], [0, 0, 1, 1], [], []>} : vector<24x24xf32>, vector<24x256xf32>, vector<24x256xf32> -> vector<24x256xf32>
    %97 = arith.addf %93, %96 : vector<24x256xf32>
    %c0_50 = arith.constant 0 : index
    %c0_51 = arith.constant 0 : index
    %98 = vector.load %arg7[%c0_50, %c0_51] : memref<24x1xf32, #tpu.memory_space<vmem>>, vector<24x1xf32>
    %99 = vector.broadcast %98 : vector<24x1xf32> to vector<24x256xf32>
    %100 = arith.addf %97, %99 : vector<24x256xf32>
    %cst_52 = arith.constant dense<0.000000e+00> : vector<24xf32>
    %101 = vector.multi_reduction <add>, %100, %cst_52 [1] : vector<24x256xf32> to vector<24xf32>
    %102 = vector.shape_cast %101 : vector<24xf32> to vector<24x1xf32>
    %103 = arith.mulf %100, %100 : vector<24x256xf32>
    %cst_53 = arith.constant dense<0.000000e+00> : vector<24xf32>
    %104 = vector.multi_reduction <add>, %103, %cst_53 [1] : vector<24x256xf32> to vector<24xf32>
    %105 = vector.shape_cast %104 : vector<24xf32> to vector<24x1xf32>
    %cst_54 = arith.constant 3.906250e-03 : f32
    %106 = vector.broadcast %cst_54 : f32 to vector<24x1xf32>
    %107 = arith.mulf %102, %106 : vector<24x1xf32>
    %cst_55 = arith.constant 3.906250e-03 : f32
    %108 = vector.broadcast %cst_55 : f32 to vector<24x1xf32>
    %109 = arith.mulf %105, %108 : vector<24x1xf32>
    %110 = arith.mulf %107, %107 : vector<24x1xf32>
    %111 = arith.subf %109, %110 : vector<24x1xf32>
    %cst_56 = arith.constant 0.000000e+00 : f32
    %112 = vector.broadcast %cst_56 : f32 to vector<24x1xf32>
    %113 = arith.maximumf %111, %112 : vector<24x1xf32>
    %c0_57 = arith.constant 0 : index
    %c0_58 = arith.constant 0 : index
    %114 = vector.load %arg8[%c0_57, %c0_58] : memref<24x1xf32, #tpu.memory_space<vmem>>, vector<24x1xf32>
    %cst_59 = arith.constant 9.99999974E-6 : f32
    %115 = vector.broadcast %cst_59 : f32 to vector<24x1xf32>
    %116 = arith.addf %113, %115 : vector<24x1xf32>
    %117 = math.rsqrt %116 : vector<24x1xf32>
    %118 = arith.mulf %114, %117 : vector<24x1xf32>
    %c0_60 = arith.constant 0 : index
    %c0_61 = arith.constant 0 : index
    %119 = vector.load %arg9[%c0_60, %c0_61] : memref<24x1xf32, #tpu.memory_space<vmem>>, vector<24x1xf32>
    %120 = arith.mulf %107, %118 : vector<24x1xf32>
    %121 = arith.subf %119, %120 : vector<24x1xf32>
    %122 = vector.broadcast %118 : vector<24x1xf32> to vector<24x256xf32>
    %123 = arith.mulf %100, %122 : vector<24x256xf32>
    %124 = vector.broadcast %121 : vector<24x1xf32> to vector<24x256xf32>
    %125 = arith.addf %123, %124 : vector<24x256xf32>
    %cst_62 = arith.constant 0.000000e+00 : f32
    %126 = vector.broadcast %cst_62 : f32 to vector<24x256xf32>
    %127 = arith.maximumf %125, %126 : vector<24x256xf32>
    %c1_i32_63 = arith.constant 1 : i32
    %128 = tpu.dynamic_rotate %127 by %c1_i32_63 dim 1 : vector<24x256xf32>, i32 -> vector<24x256xf32>
    %cst_64 = arith.constant 0.000000e+00 : f32
    %129 = vector.shape_cast %18 : vector<1x256xi1> to vector<1x256xi1>
    %130 = vector.broadcast %129 : vector<1x256xi1> to vector<24x256xi1>
    %131 = vector.broadcast %cst_64 : f32 to vector<24x256xf32>
    %132 = arith.select %130, %128, %131 : vector<24x256xi1>, vector<24x256xf32>
    %c255_i32_65 = arith.constant 255 : i32
    %133 = tpu.dynamic_rotate %127 by %c255_i32_65 dim 1 : vector<24x256xf32>, i32 -> vector<24x256xf32>
    %cst_66 = arith.constant 0.000000e+00 : f32
    %134 = vector.shape_cast %20 : vector<1x256xi1> to vector<1x256xi1>
    %135 = vector.broadcast %134 : vector<1x256xi1> to vector<24x256xi1>
    %136 = vector.broadcast %cst_66 : f32 to vector<24x256xf32>
    %137 = arith.select %135, %133, %136 : vector<24x256xi1>, vector<24x256xf32>
    %c1_67 = arith.constant 1 : index
    %c0_68 = arith.constant 0 : index
    %c0_69 = arith.constant 0 : index
    %138 = vector.load %arg10[%c1_67, %c0_68, %c0_69] : memref<3x48x24xf32, #tpu.memory_space<vmem>>, vector<1x48x24xf32>
    %139 = vector.shape_cast %138 : vector<1x48x24xf32> to vector<48x24xf32>
    %cst_70 = arith.constant dense<0.000000e+00> : vector<48x256xf32>
    %140 = tpu.matmul %139, %127, %cst_70 {dimension_numbers = #tpu.dot_dimension_numbers<[1], [0], [0], [1], [0, 0, 1, 1], [], []>} : vector<48x24xf32>, vector<24x256xf32>, vector<48x256xf32> -> vector<48x256xf32>
    %c0_71 = arith.constant 0 : index
    %c0_72 = arith.constant 0 : index
    %c0_73 = arith.constant 0 : index
    %141 = vector.load %arg10[%c0_71, %c0_72, %c0_73] : memref<3x48x24xf32, #tpu.memory_space<vmem>>, vector<1x48x24xf32>
    %142 = vector.shape_cast %141 : vector<1x48x24xf32> to vector<48x24xf32>
    %cst_74 = arith.constant dense<0.000000e+00> : vector<48x256xf32>
    %143 = tpu.matmul %142, %132, %cst_74 {dimension_numbers = #tpu.dot_dimension_numbers<[1], [0], [0], [1], [0, 0, 1, 1], [], []>} : vector<48x24xf32>, vector<24x256xf32>, vector<48x256xf32> -> vector<48x256xf32>
    %144 = arith.addf %140, %143 : vector<48x256xf32>
    %c2_75 = arith.constant 2 : index
    %c0_76 = arith.constant 0 : index
    %c0_77 = arith.constant 0 : index
    %145 = vector.load %arg10[%c2_75, %c0_76, %c0_77] : memref<3x48x24xf32, #tpu.memory_space<vmem>>, vector<1x48x24xf32>
    %146 = vector.shape_cast %145 : vector<1x48x24xf32> to vector<48x24xf32>
    %cst_78 = arith.constant dense<0.000000e+00> : vector<48x256xf32>
    %147 = tpu.matmul %146, %137, %cst_78 {dimension_numbers = #tpu.dot_dimension_numbers<[1], [0], [0], [1], [0, 0, 1, 1], [], []>} : vector<48x24xf32>, vector<24x256xf32>, vector<48x256xf32> -> vector<48x256xf32>
    %148 = arith.addf %144, %147 : vector<48x256xf32>
    %c0_79 = arith.constant 0 : index
    %c0_80 = arith.constant 0 : index
    %149 = vector.load %arg11[%c0_79, %c0_80] : memref<48x1xf32, #tpu.memory_space<vmem>>, vector<48x1xf32>
    %150 = vector.broadcast %149 : vector<48x1xf32> to vector<48x256xf32>
    %151 = arith.addf %148, %150 : vector<48x256xf32>
    %cst_81 = arith.constant dense<0.000000e+00> : vector<48xf32>
    %152 = vector.multi_reduction <add>, %151, %cst_81 [1] : vector<48x256xf32> to vector<48xf32>
    %153 = vector.shape_cast %152 : vector<48xf32> to vector<48x1xf32>
    %154 = arith.mulf %151, %151 : vector<48x256xf32>
    %cst_82 = arith.constant dense<0.000000e+00> : vector<48xf32>
    %155 = vector.multi_reduction <add>, %154, %cst_82 [1] : vector<48x256xf32> to vector<48xf32>
    %156 = vector.shape_cast %155 : vector<48xf32> to vector<48x1xf32>
    %cst_83 = arith.constant 3.906250e-03 : f32
    %157 = vector.broadcast %cst_83 : f32 to vector<48x1xf32>
    %158 = arith.mulf %153, %157 : vector<48x1xf32>
    %cst_84 = arith.constant 3.906250e-03 : f32
    %159 = vector.broadcast %cst_84 : f32 to vector<48x1xf32>
    %160 = arith.mulf %156, %159 : vector<48x1xf32>
    %161 = arith.mulf %158, %158 : vector<48x1xf32>
    %162 = arith.subf %160, %161 : vector<48x1xf32>
    %cst_85 = arith.constant 0.000000e+00 : f32
    %163 = vector.broadcast %cst_85 : f32 to vector<48x1xf32>
    %164 = arith.maximumf %162, %163 : vector<48x1xf32>
    %c0_86 = arith.constant 0 : index
    %c0_87 = arith.constant 0 : index
    %165 = vector.load %arg12[%c0_86, %c0_87] : memref<48x1xf32, #tpu.memory_space<vmem>>, vector<48x1xf32>
    %cst_88 = arith.constant 9.99999974E-6 : f32
    %166 = vector.broadcast %cst_88 : f32 to vector<48x1xf32>
    %167 = arith.addf %164, %166 : vector<48x1xf32>
    %168 = math.rsqrt %167 : vector<48x1xf32>
    %169 = arith.mulf %165, %168 : vector<48x1xf32>
    %c0_89 = arith.constant 0 : index
    %c0_90 = arith.constant 0 : index
    %170 = vector.load %arg13[%c0_89, %c0_90] : memref<48x1xf32, #tpu.memory_space<vmem>>, vector<48x1xf32>
    %171 = arith.mulf %158, %169 : vector<48x1xf32>
    %172 = arith.subf %170, %171 : vector<48x1xf32>
    %173 = vector.broadcast %169 : vector<48x1xf32> to vector<48x256xf32>
    %174 = arith.mulf %151, %173 : vector<48x256xf32>
    %175 = vector.broadcast %172 : vector<48x1xf32> to vector<48x256xf32>
    %176 = arith.addf %174, %175 : vector<48x256xf32>
    %cst_91 = arith.constant 0.000000e+00 : f32
    %177 = vector.broadcast %cst_91 : f32 to vector<48x256xf32>
    %178 = arith.maximumf %176, %177 : vector<48x256xf32>
    %179 = vector.extract_strided_slice %178 {offsets = [0, 0], sizes = [48, 128], strides = [1, 1]} : vector<48x256xf32> to vector<48x128xf32>
    %c0_92 = arith.constant 0 : index
    %c0_93 = arith.constant 0 : index
    %c0_94 = arith.constant 0 : index
    %180 = vector.load %arg14[%c0_92, %c0_93, %c0_94] : memref<2x48x128xf32, #tpu.memory_space<vmem>>, vector<1x48x128xf32>
    %181 = vector.shape_cast %180 : vector<1x48x128xf32> to vector<48x128xf32>
    %182 = vector.shape_cast %179 : vector<48x128xf32> to vector<1x48x128xf32>
    tpu.vector_store %arg14[%c0_92, %c0_93, %c0_94], %182 {strides = array<i32>} : memref<2x48x128xf32, #tpu.memory_space<vmem>>, vector<1x48x128xf32>,
    %183 = vector.extract_strided_slice %178 {offsets = [0, 128], sizes = [48, 128], strides = [1, 1]} : vector<48x256xf32> to vector<48x128xf32>
    %c1_95 = arith.constant 1 : index
    %c0_96 = arith.constant 0 : index
    %c0_97 = arith.constant 0 : index
    %184 = vector.load %arg14[%c1_95, %c0_96, %c0_97] : memref<2x48x128xf32, #tpu.memory_space<vmem>>, vector<1x48x128xf32>
    %185 = vector.shape_cast %184 : vector<1x48x128xf32> to vector<48x128xf32>
    %186 = vector.shape_cast %183 : vector<48x128xf32> to vector<1x48x128xf32>
    tpu.vector_store %arg14[%c1_95, %c0_96, %c0_97], %186 {strides = array<i32>} : memref<2x48x128xf32, #tpu.memory_space<vmem>>, vector<1x48x128xf32>,
    return
  }
  func.func @transform_0(%arg0: i32) -> (i32, i32, i32) {
    %c0_i32 = arith.constant 0 : i32
    %c0_i32_0 = arith.constant 0 : i32
    %c0_i32_1 = arith.constant 0 : i32
    %c0_i32_2 = arith.constant 0 : i32
    return %c0_i32, %c0_i32_0, %c0_i32_1 : i32, i32, i32
  }
  func.func @transform_1(%arg0: i32) -> (i32, i32, i32) {
    %c0_i32 = arith.constant 0 : i32
    %c0_i32_0 = arith.constant 0 : i32
    %c0_i32_1 = arith.constant 0 : i32
    %c0_i32_2 = arith.constant 0 : i32
    return %c0_i32, %c0_i32_0, %c0_i32_1 : i32, i32, i32
  }
  func.func @transform_2(%arg0: i32) -> (i32, i32) {
    %c0_i32 = arith.constant 0 : i32
    %c0_i32_0 = arith.constant 0 : i32
    %c0_i32_1 = arith.constant 0 : i32
    return %c0_i32, %c0_i32_0 : i32, i32
  }
  func.func @transform_3(%arg0: i32) -> (i32, i32) {
    %c0_i32 = arith.constant 0 : i32
    %c0_i32_0 = arith.constant 0 : i32
    %c0_i32_1 = arith.constant 0 : i32
    return %c0_i32, %c0_i32_0 : i32, i32
  }
  func.func @transform_4(%arg0: i32) -> (i32, i32) {
    %c0_i32 = arith.constant 0 : i32
    %c0_i32_0 = arith.constant 0 : i32
    %c0_i32_1 = arith.constant 0 : i32
    return %c0_i32, %c0_i32_0 : i32, i32
  }
  func.func @transform_5(%arg0: i32) -> (i32, i32, i32) {
    %c0_i32 = arith.constant 0 : i32
    %c0_i32_0 = arith.constant 0 : i32
    %c0_i32_1 = arith.constant 0 : i32
    %c0_i32_2 = arith.constant 0 : i32
    return %c0_i32, %c0_i32_0, %c0_i32_1 : i32, i32, i32
  }
  func.func @transform_6(%arg0: i32) -> (i32, i32) {
    %c0_i32 = arith.constant 0 : i32
    %c0_i32_0 = arith.constant 0 : i32
    %c0_i32_1 = arith.constant 0 : i32
    return %c0_i32, %c0_i32_0 : i32, i32
  }
  func.func @transform_7(%arg0: i32) -> (i32, i32) {
    %c0_i32 = arith.constant 0 : i32
    %c0_i32_0 = arith.constant 0 : i32
    %c0_i32_1 = arith.constant 0 : i32
    return %c0_i32, %c0_i32_0 : i32, i32
  }
  func.func @transform_8(%arg0: i32) -> (i32, i32) {
    %c0_i32 = arith.constant 0 : i32
    %c0_i32_0 = arith.constant 0 : i32
    %c0_i32_1 = arith.constant 0 : i32
    return %c0_i32, %c0_i32_0 : i32, i32
  }
  func.func @transform_9(%arg0: i32) -> (i32, i32, i32) {
    %c0_i32 = arith.constant 0 : i32
    %c0_i32_0 = arith.constant 0 : i32
    %c0_i32_1 = arith.constant 0 : i32
    %c0_i32_2 = arith.constant 0 : i32
    return %c0_i32, %c0_i32_0, %c0_i32_1 : i32, i32, i32
  }
  func.func @transform_10(%arg0: i32) -> (i32, i32) {
    %c0_i32 = arith.constant 0 : i32
    %c0_i32_0 = arith.constant 0 : i32
    %c0_i32_1 = arith.constant 0 : i32
    return %c0_i32, %c0_i32_0 : i32, i32
  }
  func.func @transform_11(%arg0: i32) -> (i32, i32) {
    %c0_i32 = arith.constant 0 : i32
    %c0_i32_0 = arith.constant 0 : i32
    %c0_i32_1 = arith.constant 0 : i32
    return %c0_i32, %c0_i32_0 : i32, i32
  }
  func.func @transform_12(%arg0: i32) -> (i32, i32) {
    %c0_i32 = arith.constant 0 : i32
    %c0_i32_0 = arith.constant 0 : i32
    %c0_i32_1 = arith.constant 0 : i32
    return %c0_i32, %c0_i32_0 : i32, i32
  }
  func.func @transform_13(%arg0: i32) -> (i32, i32, i32) {
    %c0_i32 = arith.constant 0 : i32
    %c0_i32_0 = arith.constant 0 : i32
    %c0_i32_1 = arith.constant 0 : i32
    %c0_i32_2 = arith.constant 0 : i32
    return %c0_i32, %c0_i32_0, %c0_i32_1 : i32, i32, i32
  }
}

</mosaic_0001>

<llo_original>
// kernel: res_block.1
$region0: #{res_block.1}
  #allocation0 [shape = 'u32[]', space=smem, size = 0x4, offset = 0x4, fixed_abs, tag = 'smem constant byte address 0x4 - core index']
  #allocation1 [shape = 'u32[72,128]{1,0:T(1,128)}', space=vmem, size = 0x9000, scoped, tag = 'internal scratch']
  %s0 = inlined_call_operand.vmem [shape: f32[2,48,128], index: 0, kind: input, shape index: {}]
  %s1 = inlined_call_operand.vmem [shape: f32[3,24,48], index: 1, kind: input, shape index: {}]
  %s2 = inlined_call_operand.vmem [shape: f32[24,1], index: 2, kind: input, shape index: {}]
  %s3 = inlined_call_operand.vmem [shape: f32[24,1], index: 3, kind: input, shape index: {}]
  %s4 = inlined_call_operand.vmem [shape: f32[24,1], index: 4, kind: input, shape index: {}]
  %s5 = inlined_call_operand.vmem [shape: f32[3,24,24], index: 5, kind: input, shape index: {}]
  %s6 = inlined_call_operand.vmem [shape: f32[24,1], index: 6, kind: input, shape index: {}]
  %s7 = inlined_call_operand.vmem [shape: f32[24,1], index: 7, kind: input, shape index: {}]
  %s8 = inlined_call_operand.vmem [shape: f32[24,1], index: 8, kind: input, shape index: {}]
  %s9 = inlined_call_operand.vmem [shape: f32[3,48,24], index: 9, kind: input, shape index: {}]
  %s10 = inlined_call_operand.vmem [shape: f32[48,1], index: 10, kind: input, shape index: {}]
  %s11 = inlined_call_operand.vmem [shape: f32[48,1], index: 11, kind: input, shape index: {}]
  %s12 = inlined_call_operand.vmem [shape: f32[48,1], index: 12, kind: input, shape index: {}]
  %s13 = inlined_call_operand.hbm [shape: f32[2,48,128], index: 13, kind: output, shape index: {}]
  %s14 = sld [smem:[#allocation0]]
  $region62: #{res_block.1} parent=0
    _
  %s16 = ssub.s32 1, %s14
  %s17 = scalar_select 0, %s16, %s14
  $region1: #{res_block.1} parent=0
    #allocation2 [shape = 'u8[49152]{0}', space=vmem, size = 0xc000, scoped, tag = 'output window, operand 0, single buffered']
    #allocation3 [shape = 's32[1]{0}', space=sflag, size = 0x4, scoped, tag = 'scoped memory for res_block.1']
    %18 = vsyncpa [#allocation3], 0
    // Predicated region
    $region2: #{res_block.1} parent=1 // pred_check
      _
    $region3: #{res_block.1} parent=1 // pred_check_branch
      %20 = sbr.rel (0) target = $region5
    $region4: #{res_block.1} parent=1 // pred_region
      _
    $region5: #{res_block.1} parent=1 // pred_fallthru
      _
    // Predicated region
    $region6: #{res_block.1} parent=1 // pred_check
      _
    $region7: #{res_block.1} parent=1 // pred_check_branch
      %22 = sbr.rel (0) target = $region9
    $region8: #{res_block.1} parent=1 // pred_region
      _
    $region9: #{res_block.1} parent=1 // pred_fallthru
      _
    // Predicated region
    $region10: #{res_block.1} parent=1 // pred_check
      _
    $region11: #{res_block.1} parent=1 // pred_check_branch
      %24 = sbr.rel (0) target = $region13
    $region12: #{res_block.1} parent=1 // pred_region
      _
    $region13: #{res_block.1} parent=1 // pred_fallthru
      _
    // Predicated region
    $region14: #{res_block.1} parent=1 // pred_check
      _
    $region15: #{res_block.1} parent=1 // pred_check_branch
      %26 = sbr.rel (0) target = $region17
    $region16: #{res_block.1} parent=1 // pred_region
      _
    $region17: #{res_block.1} parent=1 // pred_fallthru
      _
    // Predicated region
    $region18: #{res_block.1} parent=1 // pred_check
      _
    $region19: #{res_block.1} parent=1 // pred_check_branch
      %28 = sbr.rel (0) target = $region21
    $region20: #{res_block.1} parent=1 // pred_region
      _
    $region21: #{res_block.1} parent=1 // pred_fallthru
      _
    // Predicated region
    $region22: #{res_block.1} parent=1 // pred_check
      _
    $region23: #{res_block.1} parent=1 // pred_check_branch
      %30 = sbr.rel (0) target = $region25
    $region24: #{res_block.1} parent=1 // pred_region
      _
    $region25: #{res_block.1} parent=1 // pred_fallthru
      _
    // Predicated region
    $region26: #{res_block.1} parent=1 // pred_check
      _
    $region27: #{res_block.1} parent=1 // pred_check_branch
      %32 = sbr.rel (0) target = $region29
    $region28: #{res_block.1} parent=1 // pred_region
      _
    $region29: #{res_block.1} parent=1 // pred_fallthru
      _
    // Predicated region
    $region30: #{res_block.1} parent=1 // pred_check
      _
    $region31: #{res_block.1} parent=1 // pred_check_branch
      %34 = sbr.rel (0) target = $region33
    $region32: #{res_block.1} parent=1 // pred_region
      _
    $region33: #{res_block.1} parent=1 // pred_fallthru
      _
    // Predicated region
    $region34: #{res_block.1} parent=1 // pred_check
      _
    $region35: #{res_block.1} parent=1 // pred_check_branch
      %36 = sbr.rel (0) target = $region37
    $region36: #{res_block.1} parent=1 // pred_region
      _
    $region37: #{res_block.1} parent=1 // pred_fallthru
      _
    // Predicated region
    $region38: #{res_block.1} parent=1 // pred_check
      _
    $region39: #{res_block.1} parent=1 // pred_check_branch
      %38 = sbr.rel (0) target = $region41
    $region40: #{res_block.1} parent=1 // pred_region
      _
    $region41: #{res_block.1} parent=1 // pred_fallthru
      _
    // Predicated region
    $region42: #{res_block.1} parent=1 // pred_check
      _
    $region43: #{res_block.1} parent=1 // pred_check_branch
      %40 = sbr.rel (0) target = $region45
    $region44: #{res_block.1} parent=1 // pred_region
      _
    $region45: #{res_block.1} parent=1 // pred_fallthru
      _
    // Predicated region
    $region46: #{res_block.1} parent=1 // pred_check
      _
    $region47: #{res_block.1} parent=1 // pred_check_branch
      %42 = sbr.rel (0) target = $region49
    $region48: #{res_block.1} parent=1 // pred_region
      _
    $region49: #{res_block.1} parent=1 // pred_fallthru
      _
    // Predicated region
    $region50: #{res_block.1} parent=1 // pred_check
      _
    $region51: #{res_block.1} parent=1 // pred_check_branch
      %44 = sbr.rel (0) target = $region53
    $region52: #{res_block.1} parent=1 // pred_region
      _
    $region53: #{res_block.1} parent=1 // pred_fallthru
      _
    %v45 = vlaneseq
    %v46 = vand.u32 %v45, 127
    %v47 = vadd.s32 %v46, 128
    %vm48 = vcmp.lt.s32.totalorder %v46, 0
    %v49 = vsub.s32 0, %v46
    %v50 = vsel %vm48, %v49, %v46
    %v51 = vshrl.u32 %v50, 7
    %v52 = vand.u32 %v50, 127
    %v53 = vsub.s32 0, %v52
    %v54 = vsel %vm48, %v53, %v52
    %vm55 = vcmp.lt.s32.totalorder %v47, 0
    %v56 = vsub.s32 0, %v47
    %v57 = vsel %vm55, %v56, %v47
    %v58 = vshrl.u32 %v57, 7
    %v59 = vand.u32 %v57, 127
    %v60 = vsub.s32 0, %v59
    %v61 = vsel %vm55, %v60, %v59
    %vm62 = vcmp.ne.s32.totalorder %v54, 0
    %vm63 = vcmp.ne.s32.totalorder %v61, 0
    %vm64 = vcmp.lt.s32.totalorder %v54, 0
    %vm65 = vcmp.lt.s32.totalorder %v61, 0
    %vm66 = vmand %vm64, %vm62
    %vm67 = vmand %vm65, %vm63
    %v68 = vadd.s32 %v54, 128
    %v69 = vadd.s32 %v61, 128
    %v70 = vsel %vm66, %v68, %v54
    %v71 = vsel %vm67, %v69, %v61
    %vm72 = vcmp.ne.s32.totalorder %v70, 0
    %vm73 = vcmp.ne.s32.totalorder %v71, 0
    %vm74 = vcmp.ne.s32.totalorder %v70, 127
    %vm75 = vcmp.ne.s32.totalorder %v71, 127
    %v76 = vld [vmem:[%s0] sm:$0xff]
    %v77 = vld [vmem:[%s0 + $0x8] sm:$0xff]
    %v78 = vld [vmem:[%s0 + $0x10] sm:$0xff]
    %v79 = vld [vmem:[%s0 + $0x18] sm:$0xff]
    %v80 = vld [vmem:[%s0 + $0x20] sm:$0xff]
    %v81 = vld [vmem:[%s0 + $0x28] sm:$0xff]
    %s82 = scalar_lea.vmem %s0, 48
    %v83 = vld [vmem:[%s82] sm:$0xff]
    %v84 = vld [vmem:[%s82 + $0x8] sm:$0xff]
    %v85 = vld [vmem:[%s82 + $0x10] sm:$0xff]
    %v86 = vld [vmem:[%s82 + $0x18] sm:$0xff]
    %v87 = vld [vmem:[%s82 + $0x20] sm:$0xff]
    %v88 = vld [vmem:[%s82 + $0x28] sm:$0xff]
    %89 = vrot.lane.b32.xlu0 %v76, 1
    %v90 = vpop.permute.xlu0 %89
    %91 = vrot.lane.b32.xlu0 %v77, 1
    %v92 = vpop.permute.xlu0 %91
    %93 = vrot.lane.b32.xlu0 %v78, 1
    %v94 = vpop.permute.xlu0 %93
    %95 = vrot.lane.b32.xlu0 %v79, 1
    %v96 = vpop.permute.xlu0 %95
    %97 = vrot.lane.b32.xlu0 %v80, 1
    %v98 = vpop.permute.xlu0 %97
    %99 = vrot.lane.b32.xlu0 %v81, 1
    %v100 = vpop.permute.xlu0 %99
    %101 = vrot.lane.b32.xlu0 %v83, 1
    %v102 = vpop.permute.xlu0 %101
    %103 = vrot.lane.b32.xlu0 %v84, 1
    %v104 = vpop.permute.xlu0 %103
    %105 = vrot.lane.b32.xlu0 %v85, 1
    %v106 = vpop.permute.xlu0 %105
    %107 = vrot.lane.b32.xlu0 %v86, 1
    %v108 = vpop.permute.xlu0 %107
    %109 = vrot.lane.b32.xlu0 %v87, 1
    %v110 = vpop.permute.xlu0 %109
    %111 = vrot.lane.b32.xlu0 %v88, 1
    %v112 = vpop.permute.xlu0 %111
    %vm113 = vcmp.lt.s32.totalorder %v46, 1
    %v114 = vsel %vm113, %v90, %v102
    %v115 = vsel %vm113, %v92, %v104
    %v116 = vsel %vm113, %v94, %v106
    %v117 = vsel %vm113, %v96, %v108
    %v118 = vsel %vm113, %v98, %v110
    %v119 = vsel %vm113, %v100, %v112
    %v120 = vsel %vm113, %v102, %v90
    %v121 = vsel %vm113, %v104, %v92
    %v122 = vsel %vm113, %v106, %v94
    %v123 = vsel %vm113, %v108, %v96
    %v124 = vsel %vm113, %v110, %v98
    %v125 = vsel %vm113, %v112, %v100
    %v126 = vsel %vm72, 1, 0
    %v127 = vsel %vm73, 1, 0
    %vm128 = vcmp.eq.s32.totalorder %v126, 1
    %vm129 = vcmp.eq.s32.totalorder %v127, 1
    %v130 = vsel %vm128, %v120, 0.0
    %v131 = vsel %vm129, %v114, 0.0
    %v132 = vsel %vm128, %v121, 0.0
    %v133 = vsel %vm129, %v115, 0.0
    %v134 = vsel %vm128, %v122, 0.0
    %v135 = vsel %vm129, %v116, 0.0
    %v136 = vsel %vm128, %v123, 0.0
    %v137 = vsel %vm129, %v117, 0.0
    %v138 = vsel %vm128, %v124, 0.0
    %v139 = vsel %vm129, %v118, 0.0
    %v140 = vsel %vm128, %v125, 0.0
    %v141 = vsel %vm129, %v119, 0.0
    %142 = vrot.lane.b32.xlu0 %v76, 127
    %v143 = vpop.permute.xlu0 %142
    %144 = vrot.lane.b32.xlu0 %v77, 127
    %v145 = vpop.permute.xlu0 %144
    %146 = vrot.lane.b32.xlu0 %v78, 127
    %v147 = vpop.permute.xlu0 %146
    %148 = vrot.lane.b32.xlu0 %v79, 127
    %v149 = vpop.permute.xlu0 %148
    %150 = vrot.lane.b32.xlu0 %v80, 127
    %v151 = vpop.permute.xlu0 %150
    %152 = vrot.lane.b32.xlu0 %v81, 127
    %v153 = vpop.permute.xlu0 %152
    %154 = vrot.lane.b32.xlu0 %v83, 127
    %v155 = vpop.permute.xlu0 %154
    %156 = vrot.lane.b32.xlu0 %v84, 127
    %v157 = vpop.permute.xlu0 %156
    %158 = vrot.lane.b32.xlu0 %v85, 127
    %v159 = vpop.permute.xlu0 %158
    %160 = vrot.lane.b32.xlu0 %v86, 127
    %v161 = vpop.permute.xlu0 %160
    %162 = vrot.lane.b32.xlu0 %v87, 127
    %v163 = vpop.permute.xlu0 %162
    %164 = vrot.lane.b32.xlu0 %v88, 127
    %v165 = vpop.permute.xlu0 %164
    %vm166 = vcmp.lt.s32.totalorder %v46, 127
    %v167 = vsel %vm166, %v143, %v155
    %v168 = vsel %vm166, %v145, %v157
    %v169 = vsel %vm166, %v147, %v159
    %v170 = vsel %vm166, %v149, %v161
    %v171 = vsel %vm166, %v151, %v163
    %v172 = vsel %vm166, %v153, %v165
    %v173 = vsel %vm166, %v155, %v143
    %v174 = vsel %vm166, %v157, %v145
    %v175 = vsel %vm166, %v159, %v147
    %v176 = vsel %vm166, %v161, %v149
    %v177 = vsel %vm166, %v163, %v151
    %v178 = vsel %vm166, %v165, %v153
    %v179 = vsel %vm74, 1, 0
    %v180 = vsel %vm75, 1, 0
    %vm181 = vcmp.eq.s32.totalorder %v179, 1
    %vm182 = vcmp.eq.s32.totalorder %v180, 1
    %v183 = vsel %vm181, %v167, 0.0
    %v184 = vsel %vm182, %v173, 0.0
    %v185 = vsel %vm181, %v168, 0.0
    %v186 = vsel %vm182, %v174, 0.0
    %v187 = vsel %vm181, %v169, 0.0
    %v188 = vsel %vm182, %v175, 0.0
    %v189 = vsel %vm181, %v170, 0.0
    %v190 = vsel %vm182, %v176, 0.0
    %v191 = vsel %vm181, %v171, 0.0
    %v192 = vsel %vm182, %v177, 0.0
    %v193 = vsel %vm181, %v172, 0.0
    %v194 = vsel %vm182, %v178, 0.0
    %s195 = scalar_lea.vmem %s1, 24
    %v196 = vld [vmem:[%s195] sm:$0xff]
    %v197 = vld [vmem:[%s195 + $0x8] sm:$0xff]
    %v198 = vld [vmem:[%s195 + $0x10] sm:$0xff]
    %v199 = vld [vmem:[%s1] sm:$0xff]
    %v200 = vld [vmem:[%s1 + $0x8] sm:$0xff]
    %v201 = vld [vmem:[%s1 + $0x10] sm:$0xff]
    %vm202 = vcmask 392192
    %v204 = vsel %vm202, %v199, 0
    %v207 = vsel %vm202, %v200, 0
    %v210 = vsel %vm202, %v201, 0
    %212 = vmatpush.msra.mxu0 0.0
    %213 = vmatpush.msra.mxu0 0.0
    %214 = vmatpush.msra.mxu0 0.0
    %215 = vmatpush.msra.mxu0 0.0
    %216 = vmatpush.msra.mxu0 0.0
    %217 = vmatpush.msra.mxu0 0.0
    %218 = vmatpush.msra.mxu0 0.0
    %219 = vmatpush.msra.mxu0 0.0
    %220 = vmatpush.msra.mxu0 0.0
    %221 = vmatpush.msra.mxu0 0.0
    %222 = vmatpush.msra.mxu0 %v140
    %223 = vmatpush.msra.mxu0 %v138
    %224 = vmatpush.msra.mxu0 %v136
    %225 = vmatpush.msra.mxu0 %v134
    %226 = vmatpush.msra.mxu0 %v132
    %227 = vmatpush.msra.mxu0 %v130
    %228 = vmatmul.f32.gmra.mxu0 %v204
    %v229 = vpop.f32.mrf.mxu0
    %v230 = vadd.f32 0.0, %v229
    %231 = vmatmul.f32.gmra.mxu0 %v207
    %v232 = vpop.f32.mrf.mxu0
    %v233 = vadd.f32 0.0, %v232
    %234 = vmatmul.f32.gmra.mxu0 %v210
    %v235 = vpop.f32.mrf.mxu0
    %v236 = vadd.f32 0.0, %v235
    %237 = vdwg.mxu0
    %238 = vmatpush.msra.mxu0 0.0
    %239 = vmatpush.msra.mxu0 0.0
    %240 = vmatpush.msra.mxu0 0.0
    %241 = vmatpush.msra.mxu0 0.0
    %242 = vmatpush.msra.mxu0 0.0
    %243 = vmatpush.msra.mxu0 0.0
    %244 = vmatpush.msra.mxu0 0.0
    %245 = vmatpush.msra.mxu0 0.0
    %246 = vmatpush.msra.mxu0 0.0
    %247 = vmatpush.msra.mxu0 0.0
    %248 = vmatpush.msra.mxu0 %v141
    %249 = vmatpush.msra.mxu0 %v139
    %250 = vmatpush.msra.mxu0 %v137
    %251 = vmatpush.msra.mxu0 %v135
    %252 = vmatpush.msra.mxu0 %v133
    %253 = vmatpush.msra.mxu0 %v131
    %254 = vmatmul.f32.gmra.mxu0 %v204
    %v255 = vpop.f32.mrf.mxu0
    %v256 = vadd.f32 0.0, %v255
    %257 = vmatmul.f32.gmra.mxu0 %v207
    %v258 = vpop.f32.mrf.mxu0
    %v259 = vadd.f32 0.0, %v258
    %260 = vmatmul.f32.gmra.mxu0 %v210
    %v261 = vpop.f32.mrf.mxu0
    %v262 = vadd.f32 0.0, %v261
    %263 = vdwg.mxu0
    %v265 = vsel %vm202, %v196, 0
    %v268 = vsel %vm202, %v197, 0
    %v271 = vsel %vm202, %v198, 0
    %273 = vmatpush.msra.mxu0 0.0
    %274 = vmatpush.msra.mxu0 0.0
    %275 = vmatpush.msra.mxu0 0.0
    %276 = vmatpush.msra.mxu0 0.0
    %277 = vmatpush.msra.mxu0 0.0
    %278 = vmatpush.msra.mxu0 0.0
    %279 = vmatpush.msra.mxu0 0.0
    %280 = vmatpush.msra.mxu0 0.0
    %281 = vmatpush.msra.mxu0 0.0
    %282 = vmatpush.msra.mxu0 0.0
    %283 = vmatpush.msra.mxu0 %v81
    %284 = vmatpush.msra.mxu0 %v80
    %285 = vmatpush.msra.mxu0 %v79
    %286 = vmatpush.msra.mxu0 %v78
    %287 = vmatpush.msra.mxu0 %v77
    %288 = vmatpush.msra.mxu0 %v76
    %289 = vmatmul.f32.gmra.mxu0 %v265
    %v290 = vpop.f32.mrf.mxu0
    %v291 = vadd.f32 %v230, %v290
    %292 = vmatmul.f32.gmra.mxu0 %v268
    %v293 = vpop.f32.mrf.mxu0
    %v294 = vadd.f32 %v233, %v293
    %295 = vmatmul.f32.gmra.mxu0 %v271
    %v296 = vpop.f32.mrf.mxu0
    %v297 = vadd.f32 %v236, %v296
    %298 = vdwg.mxu0
    %299 = vmatpush.msra.mxu0 0.0
    %300 = vmatpush.msra.mxu0 0.0
    %301 = vmatpush.msra.mxu0 0.0
    %302 = vmatpush.msra.mxu0 0.0
    %303 = vmatpush.msra.mxu0 0.0
    %304 = vmatpush.msra.mxu0 0.0
    %305 = vmatpush.msra.mxu0 0.0
    %306 = vmatpush.msra.mxu0 0.0
    %307 = vmatpush.msra.mxu0 0.0
    %308 = vmatpush.msra.mxu0 0.0
    %309 = vmatpush.msra.mxu0 %v88
    %310 = vmatpush.msra.mxu0 %v87
    %311 = vmatpush.msra.mxu0 %v86
    %312 = vmatpush.msra.mxu0 %v85
    %313 = vmatpush.msra.mxu0 %v84
    %314 = vmatpush.msra.mxu0 %v83
    %315 = vmatmul.f32.gmra.mxu0 %v265
    %v316 = vpop.f32.mrf.mxu0
    %v317 = vadd.f32 %v256, %v316
    %318 = vmatmul.f32.gmra.mxu0 %v268
    %v319 = vpop.f32.mrf.mxu0
    %v320 = vadd.f32 %v259, %v319
    %321 = vmatmul.f32.gmra.mxu0 %v271
    %v322 = vpop.f32.mrf.mxu0
    %v323 = vadd.f32 %v262, %v322
    %324 = vdwg.mxu0
    %s325 = scalar_lea.vmem %s1, 48
    %v326 = vld [vmem:[%s325] sm:$0xff]
    %v327 = vld [vmem:[%s325 + $0x8] sm:$0xff]
    %v328 = vld [vmem:[%s325 + $0x10] sm:$0xff]
    %v330 = vsel %vm202, %v326, 0
    %v333 = vsel %vm202, %v327, 0
    %v336 = vsel %vm202, %v328, 0
    %338 = vmatpush.msra.mxu0 0.0
    %339 = vmatpush.msra.mxu0 0.0
    %340 = vmatpush.msra.mxu0 0.0
    %341 = vmatpush.msra.mxu0 0.0
    %342 = vmatpush.msra.mxu0 0.0
    %343 = vmatpush.msra.mxu0 0.0
    %344 = vmatpush.msra.mxu0 0.0
    %345 = vmatpush.msra.mxu0 0.0
    %346 = vmatpush.msra.mxu0 0.0
    %347 = vmatpush.msra.mxu0 0.0
    %348 = vmatpush.msra.mxu0 %v193
    %349 = vmatpush.msra.mxu0 %v191
    %350 = vmatpush.msra.mxu0 %v189
    %351 = vmatpush.msra.mxu0 %v187
    %352 = vmatpush.msra.mxu0 %v185
    %353 = vmatpush.msra.mxu0 %v183
    %354 = vmatmul.f32.gmra.mxu0 %v330
    %v355 = vpop.f32.mrf.mxu0
    %v356 = vadd.f32 0.0, %v355
    %357 = vmatmul.f32.gmra.mxu0 %v333
    %v358 = vpop.f32.mrf.mxu0
    %v359 = vadd.f32 0.0, %v358
    %360 = vmatmul.f32.gmra.mxu0 %v336
    %v361 = vpop.f32.mrf.mxu0
    %v362 = vadd.f32 0.0, %v361
    %363 = vdwg.mxu0
    %364 = vmatpush.msra.mxu0 0.0
    %365 = vmatpush.msra.mxu0 0.0
    %366 = vmatpush.msra.mxu0 0.0
    %367 = vmatpush.msra.mxu0 0.0
    %368 = vmatpush.msra.mxu0 0.0
    %369 = vmatpush.msra.mxu0 0.0
    %370 = vmatpush.msra.mxu0 0.0
    %371 = vmatpush.msra.mxu0 0.0
    %372 = vmatpush.msra.mxu0 0.0
    %373 = vmatpush.msra.mxu0 0.0
    %374 = vmatpush.msra.mxu0 %v194
    %375 = vmatpush.msra.mxu0 %v192
    %376 = vmatpush.msra.mxu0 %v190
    %377 = vmatpush.msra.mxu0 %v188
    %378 = vmatpush.msra.mxu0 %v186
    %379 = vmatpush.msra.mxu0 %v184
    %380 = vmatmul.f32.gmra.mxu0 %v330
    %v381 = vpop.f32.mrf.mxu0
    %v382 = vadd.f32 0.0, %v381
    %383 = vmatmul.f32.gmra.mxu0 %v333
    %v384 = vpop.f32.mrf.mxu0
    %v385 = vadd.f32 0.0, %v384
    %386 = vmatmul.f32.gmra.mxu0 %v336
    %v387 = vpop.f32.mrf.mxu0
    %v388 = vadd.f32 0.0, %v387
    %389 = vdwg.mxu0
    %v390 = vadd.f32 %v291, %v356
    %v391 = vadd.f32 %v317, %v382
    %v392 = vadd.f32 %v294, %v359
    %v393 = vadd.f32 %v320, %v385
    %v394 = vadd.f32 %v297, %v362
    %v395 = vadd.f32 %v323, %v388
    %v396 = vld [vmem:[%s2] sm:$0xff]
    %v397 = vld [vmem:[%s2 + $0x8] sm:$0xff]
    %v398 = vld [vmem:[%s2 + $0x10] sm:$0xff]
    %400 = vset.pattern.permute.xlu0 0
    %401 = vperm.xlu0 %400, %v396
    %v402 = vpop.permute.xlu0 %401
    %405 = vset.pattern.permute.xlu0 0
    %406 = vperm.xlu0 %405, %v397
    %v407 = vpop.permute.xlu0 %406
    %410 = vset.pattern.permute.xlu0 0
    %411 = vperm.xlu0 %410, %v398
    %v412 = vpop.permute.xlu0 %411
    %v414 = vadd.f32 %v390, %v402
    %v415 = vadd.f32 %v391, %v402
    %v416 = vadd.f32 %v392, %v407
    %v417 = vadd.f32 %v393, %v407
    %v418 = vadd.f32 %v394, %v412
    %v419 = vadd.f32 %v395, %v412
    %v420 = vadd.f32 %v414, %v415
    %421 = vadd.xlane.f32.xlu0 %v420
    %v422 = vpop.xlane.xlu0 %421
    %v423 = vadd.f32 %v416, %v417
    %424 = vadd.xlane.f32.xlu0 %v423
    %v425 = vpop.xlane.xlu0 %424
    %v426 = vadd.f32 %v418, %v419
    %427 = vadd.xlane.f32.xlu0 %v426
    %v428 = vpop.xlane.xlu0 %427
    %v429 = vmul.f32 %v414, %v414
    %v430 = vmul.f32 %v415, %v415
    %v431 = vmul.f32 %v416, %v416
    %v432 = vmul.f32 %v417, %v417
    %v433 = vmul.f32 %v418, %v418
    %v434 = vmul.f32 %v419, %v419
    %v435 = vadd.f32 %v429, %v430
    %436 = vadd.xlane.f32.xlu0 %v435
    %v437 = vpop.xlane.xlu0 %436
    %v438 = vadd.f32 %v431, %v432
    %439 = vadd.xlane.f32.xlu0 %v438
    %v440 = vpop.xlane.xlu0 %439
    %v441 = vadd.f32 %v433, %v434
    %442 = vadd.xlane.f32.xlu0 %v441
    %v443 = vpop.xlane.xlu0 %442
    %v444 = vmul.f32 %v422, 0.00390625
    %v445 = vmul.f32 %v425, 0.00390625
    %v446 = vmul.f32 %v428, 0.00390625
    %v447 = vmul.f32 %v437, 0.00390625
    %v448 = vmul.f32 %v440, 0.00390625
    %v449 = vmul.f32 %v443, 0.00390625
    %v450 = vmul.f32 %v444, %v444
    %v451 = vmul.f32 %v445, %v445
    %v452 = vmul.f32 %v446, %v446
    %v453 = vsub.f32 %v447, %v450
    %v454 = vsub.f32 %v448, %v451
    %v455 = vsub.f32 %v449, %v452
    %v456 = vmax.f32 %v453, 0.0
    %v457 = vmax.f32 %v454, 0.0
    %v458 = vmax.f32 %v455, 0.0
    %v459 = vld [vmem:[%s3] sm:$0xff]
    %v460 = vld [vmem:[%s3 + $0x8] sm:$0xff]
    %v461 = vld [vmem:[%s3 + $0x10] sm:$0xff]
    %v462 = vadd.f32 %v456, 1e-05
    %v463 = vadd.f32 %v457, 1e-05
    %v464 = vadd.f32 %v458, 1e-05
    %v465 = vrsqrt.pop %v462
    %v466 = vmul.f32 %v465, %v462
    %v467 = vmul.f32 %v466, %v465
    %v468 = vmul.f32 0.5, %v467
    %v469 = vsub.f32 1.5, %v468
    %v470 = vmul.f32 %v465, %v469
    %vm471 = vweird.f32 %v462
    %vm472 = vweird.f32 %v465
    %vm473 = vmor %vm471, %vm472
    %v474 = vsel %vm473, %v465, %v470
    %v475 = vrsqrt.pop %v463
    %v476 = vmul.f32 %v475, %v463
    %v477 = vmul.f32 %v476, %v475
    %v478 = vmul.f32 0.5, %v477
    %v479 = vsub.f32 1.5, %v478
    %v480 = vmul.f32 %v475, %v479
    %vm481 = vweird.f32 %v463
    %vm482 = vweird.f32 %v475
    %vm483 = vmor %vm481, %vm482
    %v484 = vsel %vm483, %v475, %v480
    %v485 = vrsqrt.pop %v464
    %v486 = vmul.f32 %v485, %v464
    %v487 = vmul.f32 %v486, %v485
    %v488 = vmul.f32 0.5, %v487
    %v489 = vsub.f32 1.5, %v488
    %v490 = vmul.f32 %v485, %v489
    %vm491 = vweird.f32 %v464
    %vm492 = vweird.f32 %v485
    %vm493 = vmor %vm491, %vm492
    %v494 = vsel %vm493, %v485, %v490
    %v495 = vmul.f32 %v459, %v474
    %v496 = vmul.f32 %v460, %v484
    %v497 = vmul.f32 %v461, %v494
    %v498 = vld [vmem:[%s4] sm:$0xff]
    %v499 = vld [vmem:[%s4 + $0x8] sm:$0xff]
    %v500 = vld [vmem:[%s4 + $0x10] sm:$0xff]
    %v501 = vmul.f32 %v444, %v495
    %v502 = vmul.f32 %v445, %v496
    %v503 = vmul.f32 %v446, %v497
    %v504 = vsub.f32 %v498, %v501
    %v505 = vsub.f32 %v499, %v502
    %v506 = vsub.f32 %v500, %v503
    %508 = vset.pattern.permute.xlu0 0
    %509 = vperm.xlu0 %508, %v495
    %v510 = vpop.permute.xlu0 %509
    %513 = vset.pattern.permute.xlu0 0
    %514 = vperm.xlu0 %513, %v496
    %v515 = vpop.permute.xlu0 %514
    %518 = vset.pattern.permute.xlu0 0
    %519 = vperm.xlu0 %518, %v497
    %v520 = vpop.permute.xlu0 %519
    %v522 = vmul.f32 %v414, %v510
    %v523 = vmul.f32 %v415, %v510
    %v524 = vmul.f32 %v416, %v515
    %v525 = vmul.f32 %v417, %v515
    %v526 = vmul.f32 %v418, %v520
    %v527 = vmul.f32 %v419, %v520
    %529 = vset.pattern.permute.xlu0 0
    %530 = vperm.xlu0 %529, %v504
    %v531 = vpop.permute.xlu0 %530
    %534 = vset.pattern.permute.xlu0 0
    %535 = vperm.xlu0 %534, %v505
    %v536 = vpop.permute.xlu0 %535
    %539 = vset.pattern.permute.xlu0 0
    %540 = vperm.xlu0 %539, %v506
    %v541 = vpop.permute.xlu0 %540
    %v543 = vadd.f32 %v522, %v531
    %v544 = vadd.f32 %v523, %v531
    %v545 = vadd.f32 %v524, %v536
    %v546 = vadd.f32 %v525, %v536
    %v547 = vadd.f32 %v526, %v541
    %v548 = vadd.f32 %v527, %v541
    %v549 = vmax.f32 %v543, 0.0
    %v550 = vmax.f32 %v544, 0.0
    %v551 = vmax.f32 %v545, 0.0
    %v552 = vmax.f32 %v546, 0.0
    %v553 = vmax.f32 %v547, 0.0
    %v554 = vmax.f32 %v548, 0.0
    %555 = vrot.lane.b32.xlu0 %v549, 1
    %v556 = vpop.permute.xlu0 %555
    %557 = vrot.lane.b32.xlu0 %v551, 1
    %v558 = vpop.permute.xlu0 %557
    %559 = vrot.lane.b32.xlu0 %v553, 1
    %v560 = vpop.permute.xlu0 %559
    %561 = vrot.lane.b32.xlu0 %v550, 1
    %v562 = vpop.permute.xlu0 %561
    %563 = vrot.lane.b32.xlu0 %v552, 1
    %v564 = vpop.permute.xlu0 %563
    %565 = vrot.lane.b32.xlu0 %v554, 1
    %v566 = vpop.permute.xlu0 %565
    %v567 = vsel %vm113, %v556, %v562
    %v568 = vsel %vm113, %v558, %v564
    %v569 = vsel %vm113, %v560, %v566
    %v570 = vsel %vm113, %v562, %v556
    %v571 = vsel %vm113, %v564, %v558
    %v572 = vsel %vm113, %v566, %v560
    %v573 = vsel %vm128, %v570, 0.0
    %v574 = vsel %vm129, %v567, 0.0
    %v575 = vsel %vm128, %v571, 0.0
    %v576 = vsel %vm129, %v568, 0.0
    %v577 = vsel %vm128, %v572, 0.0
    %v578 = vsel %vm129, %v569, 0.0
    %579 = vrot.lane.b32.xlu0 %v549, 127
    %v580 = vpop.permute.xlu0 %579
    %581 = vrot.lane.b32.xlu0 %v551, 127
    %v582 = vpop.permute.xlu0 %581
    %583 = vrot.lane.b32.xlu0 %v553, 127
    %v584 = vpop.permute.xlu0 %583
    %585 = vrot.lane.b32.xlu0 %v550, 127
    %v586 = vpop.permute.xlu0 %585
    %587 = vrot.lane.b32.xlu0 %v552, 127
    %v588 = vpop.permute.xlu0 %587
    %589 = vrot.lane.b32.xlu0 %v554, 127
    %v590 = vpop.permute.xlu0 %589
    %v591 = vsel %vm166, %v580, %v586
    %v592 = vsel %vm166, %v582, %v588
    %v593 = vsel %vm166, %v584, %v590
    %v594 = vsel %vm166, %v586, %v580
    %v595 = vsel %vm166, %v588, %v582
    %v596 = vsel %vm166, %v590, %v584
    %v597 = vsel %vm181, %v591, 0.0
    %v598 = vsel %vm182, %v594, 0.0
    %v599 = vsel %vm181, %v592, 0.0
    %v600 = vsel %vm182, %v595, 0.0
    %v601 = vsel %vm181, %v593, 0.0
    %v602 = vsel %vm182, %v596, 0.0
    %s603 = scalar_lea.vmem %s5, 24
    %v604 = vld [vmem:[%s603] sm:$0xff]
    %v605 = vld [vmem:[%s603 + $0x8] sm:$0xff]
    %v606 = vld [vmem:[%s603 + $0x10] sm:$0xff]
    %v607 = vld [vmem:[%s5] sm:$0xff]
    %v608 = vld [vmem:[%s5 + $0x8] sm:$0xff]
    %v609 = vld [vmem:[%s5 + $0x10] sm:$0xff]
    %vm610 = vcmask 195584
    %v612 = vsel %vm610, %v607, 0
    %v615 = vsel %vm610, %v608, 0
    %v618 = vsel %vm610, %v609, 0
    %620 = vmatpush.msra.mxu0 0.0
    %621 = vmatpush.msra.mxu0 0.0
    %622 = vmatpush.msra.mxu0 0.0
    %623 = vmatpush.msra.mxu0 0.0
    %624 = vmatpush.msra.mxu0 0.0
    %625 = vmatpush.msra.mxu0 0.0
    %626 = vmatpush.msra.mxu0 0.0
    %627 = vmatpush.msra.mxu0 0.0
    %628 = vmatpush.msra.mxu0 0.0
    %629 = vmatpush.msra.mxu0 0.0
    %630 = vmatpush.msra.mxu0 0.0
    %631 = vmatpush.msra.mxu0 0.0
    %632 = vmatpush.msra.mxu0 0.0
    %633 = vmatpush.msra.mxu0 %v577
    %634 = vmatpush.msra.mxu0 %v575
    %635 = vmatpush.msra.mxu0 %v573
    %636 = vmatmul.f32.gmra.mxu0 %v612
    %v637 = vpop.f32.mrf.mxu0
    %v638 = vadd.f32 0.0, %v637
    %639 = vmatmul.f32.gmra.mxu0 %v615
    %v640 = vpop.f32.mrf.mxu0
    %v641 = vadd.f32 0.0, %v640
    %642 = vmatmul.f32.gmra.mxu0 %v618
    %v643 = vpop.f32.mrf.mxu0
    %v644 = vadd.f32 0.0, %v643
    %645 = vdwg.mxu0
    %646 = vmatpush.msra.mxu0 0.0
    %647 = vmatpush.msra.mxu0 0.0
    %648 = vmatpush.msra.mxu0 0.0
    %649 = vmatpush.msra.mxu0 0.0
    %650 = vmatpush.msra.mxu0 0.0
    %651 = vmatpush.msra.mxu0 0.0
    %652 = vmatpush.msra.mxu0 0.0
    %653 = vmatpush.msra.mxu0 0.0
    %654 = vmatpush.msra.mxu0 0.0
    %655 = vmatpush.msra.mxu0 0.0
    %656 = vmatpush.msra.mxu0 0.0
    %657 = vmatpush.msra.mxu0 0.0
    %658 = vmatpush.msra.mxu0 0.0
    %659 = vmatpush.msra.mxu0 %v578
    %660 = vmatpush.msra.mxu0 %v576
    %661 = vmatpush.msra.mxu0 %v574
    %662 = vmatmul.f32.gmra.mxu0 %v612
    %v663 = vpop.f32.mrf.mxu0
    %v664 = vadd.f32 0.0, %v663
    %665 = vmatmul.f32.gmra.mxu0 %v615
    %v666 = vpop.f32.mrf.mxu0
    %v667 = vadd.f32 0.0, %v666
    %668 = vmatmul.f32.gmra.mxu0 %v618
    %v669 = vpop.f32.mrf.mxu0
    %v670 = vadd.f32 0.0, %v669
    %671 = vdwg.mxu0
    %v673 = vsel %vm610, %v604, 0
    %v676 = vsel %vm610, %v605, 0
    %v679 = vsel %vm610, %v606, 0
    %681 = vmatpush.msra.mxu0 0.0
    %682 = vmatpush.msra.mxu0 0.0
    %683 = vmatpush.msra.mxu0 0.0
    %684 = vmatpush.msra.mxu0 0.0
    %685 = vmatpush.msra.mxu0 0.0
    %686 = vmatpush.msra.mxu0 0.0
    %687 = vmatpush.msra.mxu0 0.0
    %688 = vmatpush.msra.mxu0 0.0
    %689 = vmatpush.msra.mxu0 0.0
    %690 = vmatpush.msra.mxu0 0.0
    %691 = vmatpush.msra.mxu0 0.0
    %692 = vmatpush.msra.mxu0 0.0
    %693 = vmatpush.msra.mxu0 0.0
    %694 = vmatpush.msra.mxu0 %v553
    %695 = vmatpush.msra.mxu0 %v551
    %696 = vmatpush.msra.mxu0 %v549
    %697 = vmatmul.f32.gmra.mxu0 %v673
    %v698 = vpop.f32.mrf.mxu0
    %v699 = vadd.f32 %v638, %v698
    %700 = vmatmul.f32.gmra.mxu0 %v676
    %v701 = vpop.f32.mrf.mxu0
    %v702 = vadd.f32 %v641, %v701
    %703 = vmatmul.f32.gmra.mxu0 %v679
    %v704 = vpop.f32.mrf.mxu0
    %v705 = vadd.f32 %v644, %v704
    %706 = vdwg.mxu0
    %707 = vmatpush.msra.mxu0 0.0
    %708 = vmatpush.msra.mxu0 0.0
    %709 = vmatpush.msra.mxu0 0.0
    %710 = vmatpush.msra.mxu0 0.0
    %711 = vmatpush.msra.mxu0 0.0
    %712 = vmatpush.msra.mxu0 0.0
    %713 = vmatpush.msra.mxu0 0.0
    %714 = vmatpush.msra.mxu0 0.0
    %715 = vmatpush.msra.mxu0 0.0
    %716 = vmatpush.msra.mxu0 0.0
    %717 = vmatpush.msra.mxu0 0.0
    %718 = vmatpush.msra.mxu0 0.0
    %719 = vmatpush.msra.mxu0 0.0
    %720 = vmatpush.msra.mxu0 %v554
    %721 = vmatpush.msra.mxu0 %v552
    %722 = vmatpush.msra.mxu0 %v550
    %723 = vmatmul.f32.gmra.mxu0 %v673
    %v724 = vpop.f32.mrf.mxu0
    %v725 = vadd.f32 %v664, %v724
    %726 = vmatmul.f32.gmra.mxu0 %v676
    %v727 = vpop.f32.mrf.mxu0
    %v728 = vadd.f32 %v667, %v727
    %729 = vmatmul.f32.gmra.mxu0 %v679
    %v730 = vpop.f32.mrf.mxu0
    %v731 = vadd.f32 %v670, %v730
    %732 = vdwg.mxu0
    %s733 = scalar_lea.vmem %s5, 48
    %v734 = vld [vmem:[%s733] sm:$0xff]
    %v735 = vld [vmem:[%s733 + $0x8] sm:$0xff]
    %v736 = vld [vmem:[%s733 + $0x10] sm:$0xff]
    %v738 = vsel %vm610, %v734, 0
    %v741 = vsel %vm610, %v735, 0
    %v744 = vsel %vm610, %v736, 0
    %746 = vmatpush.msra.mxu0 0.0
    %747 = vmatpush.msra.mxu0 0.0
    %748 = vmatpush.msra.mxu0 0.0
    %749 = vmatpush.msra.mxu0 0.0
    %750 = vmatpush.msra.mxu0 0.0
    %751 = vmatpush.msra.mxu0 0.0
    %752 = vmatpush.msra.mxu0 0.0
    %753 = vmatpush.msra.mxu0 0.0
    %754 = vmatpush.msra.mxu0 0.0
    %755 = vmatpush.msra.mxu0 0.0
    %756 = vmatpush.msra.mxu0 0.0
    %757 = vmatpush.msra.mxu0 0.0
    %758 = vmatpush.msra.mxu0 0.0
    %759 = vmatpush.msra.mxu0 %v601
    %760 = vmatpush.msra.mxu0 %v599
    %761 = vmatpush.msra.mxu0 %v597
    %762 = vmatmul.f32.gmra.mxu0 %v738
    %v763 = vpop.f32.mrf.mxu0
    %v764 = vadd.f32 0.0, %v763
    %765 = vmatmul.f32.gmra.mxu0 %v741
    %v766 = vpop.f32.mrf.mxu0
    %v767 = vadd.f32 0.0, %v766
    %768 = vmatmul.f32.gmra.mxu0 %v744
    %v769 = vpop.f32.mrf.mxu0
    %v770 = vadd.f32 0.0, %v769
    %771 = vdwg.mxu0
    %772 = vmatpush.msra.mxu0 0.0
    %773 = vmatpush.msra.mxu0 0.0
    %774 = vmatpush.msra.mxu0 0.0
    %775 = vmatpush.msra.mxu0 0.0
    %776 = vmatpush.msra.mxu0 0.0
    %777 = vmatpush.msra.mxu0 0.0
    %778 = vmatpush.msra.mxu0 0.0
    %779 = vmatpush.msra.mxu0 0.0
    %780 = vmatpush.msra.mxu0 0.0
    %781 = vmatpush.msra.mxu0 0.0
    %782 = vmatpush.msra.mxu0 0.0
    %783 = vmatpush.msra.mxu0 0.0
    %784 = vmatpush.msra.mxu0 0.0
    %785 = vmatpush.msra.mxu0 %v602
    %786 = vmatpush.msra.mxu0 %v600
    %787 = vmatpush.msra.mxu0 %v598
    %788 = vmatmul.f32.gmra.mxu0 %v738
    %v789 = vpop.f32.mrf.mxu0
    %v790 = vadd.f32 0.0, %v789
    %791 = vmatmul.f32.gmra.mxu0 %v741
    %v792 = vpop.f32.mrf.mxu0
    %v793 = vadd.f32 0.0, %v792
    %794 = vmatmul.f32.gmra.mxu0 %v744
    %v795 = vpop.f32.mrf.mxu0
    %v796 = vadd.f32 0.0, %v795
    %797 = vdwg.mxu0
    %v798 = vadd.f32 %v699, %v764
    %v799 = vadd.f32 %v725, %v790
    %v800 = vadd.f32 %v702, %v767
    %v801 = vadd.f32 %v728, %v793
    %v802 = vadd.f32 %v705, %v770
    %v803 = vadd.f32 %v731, %v796
    %v804 = vld [vmem:[%s6] sm:$0xff]
    %v805 = vld [vmem:[%s6 + $0x8] sm:$0xff]
    %v806 = vld [vmem:[%s6 + $0x10] sm:$0xff]
    %808 = vset.pattern.permute.xlu0 0
    %809 = vperm.xlu0 %808, %v804
    %v810 = vpop.permute.xlu0 %809
    %813 = vset.pattern.permute.xlu0 0
    %814 = vperm.xlu0 %813, %v805
    %v815 = vpop.permute.xlu0 %814
    %818 = vset.pattern.permute.xlu0 0
    %819 = vperm.xlu0 %818, %v806
    %v820 = vpop.permute.xlu0 %819
    %v822 = vadd.f32 %v798, %v810
    %v823 = vadd.f32 %v799, %v810
    %v824 = vadd.f32 %v800, %v815
    %v825 = vadd.f32 %v801, %v815
    %v826 = vadd.f32 %v802, %v820
    %v827 = vadd.f32 %v803, %v820
    %v828 = vadd.f32 %v822, %v823
    %829 = vadd.xlane.f32.xlu0 %v828
    %v830 = vpop.xlane.xlu0 %829
    %v831 = vadd.f32 %v824, %v825
    %832 = vadd.xlane.f32.xlu0 %v831
    %v833 = vpop.xlane.xlu0 %832
    %v834 = vadd.f32 %v826, %v827
    %835 = vadd.xlane.f32.xlu0 %v834
    %v836 = vpop.xlane.xlu0 %835
    %v837 = vmul.f32 %v822, %v822
    %v838 = vmul.f32 %v823, %v823
    %v839 = vmul.f32 %v824, %v824
    %v840 = vmul.f32 %v825, %v825
    %v841 = vmul.f32 %v826, %v826
    %v842 = vmul.f32 %v827, %v827
    %v843 = vadd.f32 %v837, %v838
    %844 = vadd.xlane.f32.xlu0 %v843
    %v845 = vpop.xlane.xlu0 %844
    %v846 = vadd.f32 %v839, %v840
    %847 = vadd.xlane.f32.xlu0 %v846
    %v848 = vpop.xlane.xlu0 %847
    %v849 = vadd.f32 %v841, %v842
    %850 = vadd.xlane.f32.xlu0 %v849
    %v851 = vpop.xlane.xlu0 %850
    %v852 = vmul.f32 %v830, 0.00390625
    %v853 = vmul.f32 %v833, 0.00390625
    %v854 = vmul.f32 %v836, 0.00390625
    %v855 = vmul.f32 %v845, 0.00390625
    %v856 = vmul.f32 %v848, 0.00390625
    %v857 = vmul.f32 %v851, 0.00390625
    %v858 = vmul.f32 %v852, %v852
    %v859 = vmul.f32 %v853, %v853
    %v860 = vmul.f32 %v854, %v854
    %v861 = vsub.f32 %v855, %v858
    %v862 = vsub.f32 %v856, %v859
    %v863 = vsub.f32 %v857, %v860
    %v864 = vmax.f32 %v861, 0.0
    %v865 = vmax.f32 %v862, 0.0
    %v866 = vmax.f32 %v863, 0.0
    %v867 = vld [vmem:[%s7] sm:$0xff]
    %v868 = vld [vmem:[%s7 + $0x8] sm:$0xff]
    %v869 = vld [vmem:[%s7 + $0x10] sm:$0xff]
    %v870 = vadd.f32 %v864, 1e-05
    %v871 = vadd.f32 %v865, 1e-05
    %v872 = vadd.f32 %v866, 1e-05
    %v873 = vrsqrt.pop %v870
    %v874 = vmul.f32 %v873, %v870
    %v875 = vmul.f32 %v874, %v873
    %v876 = vmul.f32 0.5, %v875
    %v877 = vsub.f32 1.5, %v876
    %v878 = vmul.f32 %v873, %v877
    %vm879 = vweird.f32 %v870
    %vm880 = vweird.f32 %v873
    %vm881 = vmor %vm879, %vm880
    %v882 = vsel %vm881, %v873, %v878
    %v883 = vrsqrt.pop %v871
    %v884 = vmul.f32 %v883, %v871
    %v885 = vmul.f32 %v884, %v883
    %v886 = vmul.f32 0.5, %v885
    %v887 = vsub.f32 1.5, %v886
    %v888 = vmul.f32 %v883, %v887
    %vm889 = vweird.f32 %v871
    %vm890 = vweird.f32 %v883
    %vm891 = vmor %vm889, %vm890
    %v892 = vsel %vm891, %v883, %v888
    %v893 = vrsqrt.pop %v872
    %v894 = vmul.f32 %v893, %v872
    %v895 = vmul.f32 %v894, %v893
    %v896 = vmul.f32 0.5, %v895
    %v897 = vsub.f32 1.5, %v896
    %v898 = vmul.f32 %v893, %v897
    %vm899 = vweird.f32 %v872
    %vm900 = vweird.f32 %v893
    %vm901 = vmor %vm899, %vm900
    %v902 = vsel %vm901, %v893, %v898
    %v903 = vmul.f32 %v867, %v882
    %v904 = vmul.f32 %v868, %v892
    %v905 = vmul.f32 %v869, %v902
    %v906 = vld [vmem:[%s8] sm:$0xff]
    %v907 = vld [vmem:[%s8 + $0x8] sm:$0xff]
    %v908 = vld [vmem:[%s8 + $0x10] sm:$0xff]
    %v909 = vmul.f32 %v852, %v903
    %v910 = vmul.f32 %v853, %v904
    %v911 = vmul.f32 %v854, %v905
    %v912 = vsub.f32 %v906, %v909
    %v913 = vsub.f32 %v907, %v910
    %v914 = vsub.f32 %v908, %v911
    %916 = vset.pattern.permute.xlu0 0
    %917 = vperm.xlu0 %916, %v903
    %v918 = vpop.permute.xlu0 %917
    %921 = vset.pattern.permute.xlu0 0
    %922 = vperm.xlu0 %921, %v904
    %v923 = vpop.permute.xlu0 %922
    %926 = vset.pattern.permute.xlu0 0
    %927 = vperm.xlu0 %926, %v905
    %v928 = vpop.permute.xlu0 %927
    %v930 = vmul.f32 %v822, %v918
    %v931 = vmul.f32 %v823, %v918
    %v932 = vmul.f32 %v824, %v923
    %v933 = vmul.f32 %v825, %v923
    %v934 = vmul.f32 %v826, %v928
    %v935 = vmul.f32 %v827, %v928
    %937 = vset.pattern.permute.xlu0 0
    %938 = vperm.xlu0 %937, %v912
    %v939 = vpop.permute.xlu0 %938
    %942 = vset.pattern.permute.xlu0 0
    %943 = vperm.xlu0 %942, %v913
    %v944 = vpop.permute.xlu0 %943
    %947 = vset.pattern.permute.xlu0 0
    %948 = vperm.xlu0 %947, %v914
    %v949 = vpop.permute.xlu0 %948
    %v951 = vadd.f32 %v930, %v939
    %v952 = vadd.f32 %v931, %v939
    %v953 = vadd.f32 %v932, %v944
    %v954 = vadd.f32 %v933, %v944
    %v955 = vadd.f32 %v934, %v949
    %v956 = vadd.f32 %v935, %v949
    %v957 = vmax.f32 %v951, 0.0
    %v958 = vmax.f32 %v952, 0.0
    %v959 = vmax.f32 %v953, 0.0
    %v960 = vmax.f32 %v954, 0.0
    %v961 = vmax.f32 %v955, 0.0
    %v962 = vmax.f32 %v956, 0.0
    %963 = vrot.lane.b32.xlu0 %v957, 1
    %v964 = vpop.permute.xlu0 %963
    %965 = vrot.lane.b32.xlu0 %v959, 1
    %v966 = vpop.permute.xlu0 %965
    %967 = vrot.lane.b32.xlu0 %v961, 1
    %v968 = vpop.permute.xlu0 %967
    %969 = vrot.lane.b32.xlu0 %v958, 1
    %v970 = vpop.permute.xlu0 %969
    %971 = vrot.lane.b32.xlu0 %v960, 1
    %v972 = vpop.permute.xlu0 %971
    %973 = vrot.lane.b32.xlu0 %v962, 1
    %v974 = vpop.permute.xlu0 %973
    %v975 = vsel %vm113, %v964, %v970
    %v976 = vsel %vm113, %v966, %v972
    %v977 = vsel %vm113, %v968, %v974
    %v978 = vsel %vm113, %v970, %v964
    %v979 = vsel %vm113, %v972, %v966
    %v980 = vsel %vm113, %v974, %v968
    %v981 = vsel %vm128, %v978, 0.0
    %v982 = vsel %vm129, %v975, 0.0
    %v983 = vsel %vm128, %v979, 0.0
    %v984 = vsel %vm129, %v976, 0.0
    %v985 = vsel %vm128, %v980, 0.0
    %v986 = vsel %vm129, %v977, 0.0
    %987 = vrot.lane.b32.xlu0 %v957, 127
    %v988 = vpop.permute.xlu0 %987
    %989 = vrot.lane.b32.xlu0 %v959, 127
    %v990 = vpop.permute.xlu0 %989
    %991 = vrot.lane.b32.xlu0 %v961, 127
    %v992 = vpop.permute.xlu0 %991
    %993 = vrot.lane.b32.xlu0 %v958, 127
    %v994 = vpop.permute.xlu0 %993
    %995 = vrot.lane.b32.xlu0 %v960, 127
    %v996 = vpop.permute.xlu0 %995
    %997 = vrot.lane.b32.xlu0 %v962, 127
    %v998 = vpop.permute.xlu0 %997
    %v999 = vsel %vm166, %v988, %v994
    %v1000 = vsel %vm166, %v990, %v996
    %v1001 = vsel %vm166, %v992, %v998
    %v1002 = vsel %vm166, %v994, %v988
    %v1003 = vsel %vm166, %v996, %v990
    %v1004 = vsel %vm166, %v998, %v992
    %v1005 = vsel %vm181, %v999, 0.0
    %v1006 = vsel %vm182, %v1002, 0.0
    %v1007 = vsel %vm181, %v1000, 0.0
    %v1008 = vsel %vm182, %v1003, 0.0
    %v1009 = vsel %vm181, %v1001, 0.0
    %v1010 = vsel %vm182, %v1004, 0.0
    %s1011 = scalar_lea.vmem %s9, 48
    %v1012 = vld [vmem:[%s1011] sm:$0xff]
    %v1013 = vld [vmem:[%s1011 + $0x8] sm:$0xff]
    %v1014 = vld [vmem:[%s1011 + $0x10] sm:$0xff]
    %v1015 = vld [vmem:[%s1011 + $0x18] sm:$0xff]
    %v1016 = vld [vmem:[%s1011 + $0x20] sm:$0xff]
    %v1017 = vld [vmem:[%s1011 + $0x28] sm:$0xff]
    %v1018 = vld [vmem:[%s9] sm:$0xff]
    %v1019 = vld [vmem:[%s9 + $0x8] sm:$0xff]
    %v1020 = vld [vmem:[%s9 + $0x10] sm:$0xff]
    %v1021 = vld [vmem:[%s9 + $0x18] sm:$0xff]
    %v1022 = vld [vmem:[%s9 + $0x20] sm:$0xff]
    %v1023 = vld [vmem:[%s9 + $0x28] sm:$0xff]
    %v1025 = vsel %vm610, %v1018, 0
    %v1028 = vsel %vm610, %v1019, 0
    %v1031 = vsel %vm610, %v1020, 0
    %v1034 = vsel %vm610, %v1021, 0
    %v1037 = vsel %vm610, %v1022, 0
    %v1040 = vsel %vm610, %v1023, 0
    %1042 = vmatpush.msra.mxu0 0.0
    %1043 = vmatpush.msra.mxu0 0.0
    %1044 = vmatpush.msra.mxu0 0.0
    %1045 = vmatpush.msra.mxu0 0.0
    %1046 = vmatpush.msra.mxu0 0.0
    %1047 = vmatpush.msra.mxu0 0.0
    %1048 = vmatpush.msra.mxu0 0.0
    %1049 = vmatpush.msra.mxu0 0.0
    %1050 = vmatpush.msra.mxu0 0.0
    %1051 = vmatpush.msra.mxu0 0.0
    %1052 = vmatpush.msra.mxu0 0.0
    %1053 = vmatpush.msra.mxu0 0.0
    %1054 = vmatpush.msra.mxu0 0.0
    %1055 = vmatpush.msra.mxu0 %v985
    %1056 = vmatpush.msra.mxu0 %v983
    %1057 = vmatpush.msra.mxu0 %v981
    %1058 = vmatmul.f32.gmra.mxu0 %v1025
    %v1059 = vpop.f32.mrf.mxu0
    %v1060 = vadd.f32 0.0, %v1059
    %1061 = vmatmul.f32.gmra.mxu0 %v1028
    %v1062 = vpop.f32.mrf.mxu0
    %v1063 = vadd.f32 0.0, %v1062
    %1064 = vmatmul.f32.gmra.mxu0 %v1031
    %v1065 = vpop.f32.mrf.mxu0
    %v1066 = vadd.f32 0.0, %v1065
    %1067 = vmatmul.f32.gmra.mxu0 %v1034
    %v1068 = vpop.f32.mrf.mxu0
    %v1069 = vadd.f32 0.0, %v1068
    %1070 = vmatmul.f32.gmra.mxu0 %v1037
    %v1071 = vpop.f32.mrf.mxu0
    %v1072 = vadd.f32 0.0, %v1071
    %1073 = vmatmul.f32.gmra.mxu0 %v1040
    %v1074 = vpop.f32.mrf.mxu0
    %v1075 = vadd.f32 0.0, %v1074
    %1076 = vdwg.mxu0
    %1077 = vmatpush.msra.mxu0 0.0
    %1078 = vmatpush.msra.mxu0 0.0
    %1079 = vmatpush.msra.mxu0 0.0
    %1080 = vmatpush.msra.mxu0 0.0
    %1081 = vmatpush.msra.mxu0 0.0
    %1082 = vmatpush.msra.mxu0 0.0
    %1083 = vmatpush.msra.mxu0 0.0
    %1084 = vmatpush.msra.mxu0 0.0
    %1085 = vmatpush.msra.mxu0 0.0
    %1086 = vmatpush.msra.mxu0 0.0
    %1087 = vmatpush.msra.mxu0 0.0
    %1088 = vmatpush.msra.mxu0 0.0
    %1089 = vmatpush.msra.mxu0 0.0
    %1090 = vmatpush.msra.mxu0 %v986
    %1091 = vmatpush.msra.mxu0 %v984
    %1092 = vmatpush.msra.mxu0 %v982
    %1093 = vmatmul.f32.gmra.mxu0 %v1025
    %v1094 = vpop.f32.mrf.mxu0
    %v1095 = vadd.f32 0.0, %v1094
    %1096 = vmatmul.f32.gmra.mxu0 %v1028
    %v1097 = vpop.f32.mrf.mxu0
    %v1098 = vadd.f32 0.0, %v1097
    %1099 = vmatmul.f32.gmra.mxu0 %v1031
    %v1100 = vpop.f32.mrf.mxu0
    %v1101 = vadd.f32 0.0, %v1100
    %1102 = vmatmul.f32.gmra.mxu0 %v1034
    %v1103 = vpop.f32.mrf.mxu0
    %v1104 = vadd.f32 0.0, %v1103
    %1105 = vmatmul.f32.gmra.mxu0 %v1037
    %v1106 = vpop.f32.mrf.mxu0
    %v1107 = vadd.f32 0.0, %v1106
    %1108 = vmatmul.f32.gmra.mxu0 %v1040
    %v1109 = vpop.f32.mrf.mxu0
    %v1110 = vadd.f32 0.0, %v1109
    %1111 = vdwg.mxu0
    %v1113 = vsel %vm610, %v1012, 0
    %v1116 = vsel %vm610, %v1013, 0
    %v1119 = vsel %vm610, %v1014, 0
    %v1122 = vsel %vm610, %v1015, 0
    %v1125 = vsel %vm610, %v1016, 0
    %v1128 = vsel %vm610, %v1017, 0
    %1130 = vmatpush.msra.mxu0 0.0
    %1131 = vmatpush.msra.mxu0 0.0
    %1132 = vmatpush.msra.mxu0 0.0
    %1133 = vmatpush.msra.mxu0 0.0
    %1134 = vmatpush.msra.mxu0 0.0
    %1135 = vmatpush.msra.mxu0 0.0
    %1136 = vmatpush.msra.mxu0 0.0
    %1137 = vmatpush.msra.mxu0 0.0
    %1138 = vmatpush.msra.mxu0 0.0
    %1139 = vmatpush.msra.mxu0 0.0
    %1140 = vmatpush.msra.mxu0 0.0
    %1141 = vmatpush.msra.mxu0 0.0
    %1142 = vmatpush.msra.mxu0 0.0
    %1143 = vmatpush.msra.mxu0 %v961
    %1144 = vmatpush.msra.mxu0 %v959
    %1145 = vmatpush.msra.mxu0 %v957
    %1146 = vmatmul.f32.gmra.mxu0 %v1113
    %v1147 = vpop.f32.mrf.mxu0
    %v1148 = vadd.f32 %v1060, %v1147
    %1149 = vmatmul.f32.gmra.mxu0 %v1116
    %v1150 = vpop.f32.mrf.mxu0
    %v1151 = vadd.f32 %v1063, %v1150
    %1152 = vmatmul.f32.gmra.mxu0 %v1119
    %v1153 = vpop.f32.mrf.mxu0
    %v1154 = vadd.f32 %v1066, %v1153
    %1155 = vmatmul.f32.gmra.mxu0 %v1122
    %v1156 = vpop.f32.mrf.mxu0
    %v1157 = vadd.f32 %v1069, %v1156
    %1158 = vmatmul.f32.gmra.mxu0 %v1125
    %v1159 = vpop.f32.mrf.mxu0
    %v1160 = vadd.f32 %v1072, %v1159
    %1161 = vmatmul.f32.gmra.mxu0 %v1128
    %v1162 = vpop.f32.mrf.mxu0
    %v1163 = vadd.f32 %v1075, %v1162
    %1164 = vdwg.mxu0
    %1165 = vmatpush.msra.mxu0 0.0
    %1166 = vmatpush.msra.mxu0 0.0
    %1167 = vmatpush.msra.mxu0 0.0
    %1168 = vmatpush.msra.mxu0 0.0
    %1169 = vmatpush.msra.mxu0 0.0
    %1170 = vmatpush.msra.mxu0 0.0
    %1171 = vmatpush.msra.mxu0 0.0
    %1172 = vmatpush.msra.mxu0 0.0
    %1173 = vmatpush.msra.mxu0 0.0
    %1174 = vmatpush.msra.mxu0 0.0
    %1175 = vmatpush.msra.mxu0 0.0
    %1176 = vmatpush.msra.mxu0 0.0
    %1177 = vmatpush.msra.mxu0 0.0
    %1178 = vmatpush.msra.mxu0 %v962
    %1179 = vmatpush.msra.mxu0 %v960
    %1180 = vmatpush.msra.mxu0 %v958
    %1181 = vmatmul.f32.gmra.mxu0 %v1113
    %v1182 = vpop.f32.mrf.mxu0
    %v1183 = vadd.f32 %v1095, %v1182
    %1184 = vmatmul.f32.gmra.mxu0 %v1116
    %v1185 = vpop.f32.mrf.mxu0
    %v1186 = vadd.f32 %v1098, %v1185
    %1187 = vmatmul.f32.gmra.mxu0 %v1119
    %v1188 = vpop.f32.mrf.mxu0
    %v1189 = vadd.f32 %v1101, %v1188
    %1190 = vmatmul.f32.gmra.mxu0 %v1122
    %v1191 = vpop.f32.mrf.mxu0
    %v1192 = vadd.f32 %v1104, %v1191
    %1193 = vmatmul.f32.gmra.mxu0 %v1125
    %v1194 = vpop.f32.mrf.mxu0
    %v1195 = vadd.f32 %v1107, %v1194
    %1196 = vmatmul.f32.gmra.mxu0 %v1128
    %v1197 = vpop.f32.mrf.mxu0
    %v1198 = vadd.f32 %v1110, %v1197
    %1199 = vdwg.mxu0
    %s1200 = scalar_lea.vmem %s9, 96
    %v1201 = vld [vmem:[%s1200] sm:$0xff]
    %v1202 = vld [vmem:[%s1200 + $0x8] sm:$0xff]
    %v1203 = vld [vmem:[%s1200 + $0x10] sm:$0xff]
    %v1204 = vld [vmem:[%s1200 + $0x18] sm:$0xff]
    %v1205 = vld [vmem:[%s1200 + $0x20] sm:$0xff]
    %v1206 = vld [vmem:[%s1200 + $0x28] sm:$0xff]
    %v1208 = vsel %vm610, %v1201, 0
    %v1211 = vsel %vm610, %v1202, 0
    %v1214 = vsel %vm610, %v1203, 0
    %v1217 = vsel %vm610, %v1204, 0
    %v1220 = vsel %vm610, %v1205, 0
    %v1223 = vsel %vm610, %v1206, 0
    %1225 = vmatpush.msra.mxu0 0.0
    %1226 = vmatpush.msra.mxu0 0.0
    %1227 = vmatpush.msra.mxu0 0.0
    %1228 = vmatpush.msra.mxu0 0.0
    %1229 = vmatpush.msra.mxu0 0.0
    %1230 = vmatpush.msra.mxu0 0.0
    %1231 = vmatpush.msra.mxu0 0.0
    %1232 = vmatpush.msra.mxu0 0.0
    %1233 = vmatpush.msra.mxu0 0.0
    %1234 = vmatpush.msra.mxu0 0.0
    %1235 = vmatpush.msra.mxu0 0.0
    %1236 = vmatpush.msra.mxu0 0.0
    %1237 = vmatpush.msra.mxu0 0.0
    %1238 = vmatpush.msra.mxu0 %v1009
    %1239 = vmatpush.msra.mxu0 %v1007
    %1240 = vmatpush.msra.mxu0 %v1005
    %1241 = vmatmul.f32.gmra.mxu0 %v1208
    %v1242 = vpop.f32.mrf.mxu0
    %v1243 = vadd.f32 0.0, %v1242
    %1244 = vmatmul.f32.gmra.mxu0 %v1211
    %v1245 = vpop.f32.mrf.mxu0
    %v1246 = vadd.f32 0.0, %v1245
    %1247 = vmatmul.f32.gmra.mxu0 %v1214
    %v1248 = vpop.f32.mrf.mxu0
    %v1249 = vadd.f32 0.0, %v1248
    %1250 = vmatmul.f32.gmra.mxu0 %v1217
    %v1251 = vpop.f32.mrf.mxu0
    %v1252 = vadd.f32 0.0, %v1251
    %1253 = vmatmul.f32.gmra.mxu0 %v1220
    %v1254 = vpop.f32.mrf.mxu0
    %v1255 = vadd.f32 0.0, %v1254
    %1256 = vmatmul.f32.gmra.mxu0 %v1223
    %v1257 = vpop.f32.mrf.mxu0
    %v1258 = vadd.f32 0.0, %v1257
    %1259 = vdwg.mxu0
    %1260 = vmatpush.msra.mxu0 0.0
    %1261 = vmatpush.msra.mxu0 0.0
    %1262 = vmatpush.msra.mxu0 0.0
    %1263 = vmatpush.msra.mxu0 0.0
    %1264 = vmatpush.msra.mxu0 0.0
    %1265 = vmatpush.msra.mxu0 0.0
    %1266 = vmatpush.msra.mxu0 0.0
    %1267 = vmatpush.msra.mxu0 0.0
    %1268 = vmatpush.msra.mxu0 0.0
    %1269 = vmatpush.msra.mxu0 0.0
    %1270 = vmatpush.msra.mxu0 0.0
    %1271 = vmatpush.msra.mxu0 0.0
    %1272 = vmatpush.msra.mxu0 0.0
    %1273 = vmatpush.msra.mxu0 %v1010
    %1274 = vmatpush.msra.mxu0 %v1008
    %1275 = vmatpush.msra.mxu0 %v1006
    %1276 = vmatmul.f32.gmra.mxu0 %v1208
    %v1277 = vpop.f32.mrf.mxu0
    %v1278 = vadd.f32 0.0, %v1277
    %1279 = vmatmul.f32.gmra.mxu0 %v1211
    %v1280 = vpop.f32.mrf.mxu0
    %v1281 = vadd.f32 0.0, %v1280
    %1282 = vmatmul.f32.gmra.mxu0 %v1214
    %v1283 = vpop.f32.mrf.mxu0
    %v1284 = vadd.f32 0.0, %v1283
    %1285 = vmatmul.f32.gmra.mxu0 %v1217
    %v1286 = vpop.f32.mrf.mxu0
    %v1287 = vadd.f32 0.0, %v1286
    %1288 = vmatmul.f32.gmra.mxu0 %v1220
    %v1289 = vpop.f32.mrf.mxu0
    %v1290 = vadd.f32 0.0, %v1289
    %1291 = vmatmul.f32.gmra.mxu0 %v1223
    %v1292 = vpop.f32.mrf.mxu0
    %v1293 = vadd.f32 0.0, %v1292
    %1294 = vdwg.mxu0
    %v1295 = vadd.f32 %v1148, %v1243
    %v1296 = vadd.f32 %v1183, %v1278
    %v1297 = vadd.f32 %v1151, %v1246
    %v1298 = vadd.f32 %v1186, %v1281
    %v1299 = vadd.f32 %v1154, %v1249
    %v1300 = vadd.f32 %v1189, %v1284
    %v1301 = vadd.f32 %v1157, %v1252
    %v1302 = vadd.f32 %v1192, %v1287
    %v1303 = vadd.f32 %v1160, %v1255
    %v1304 = vadd.f32 %v1195, %v1290
    %v1305 = vadd.f32 %v1163, %v1258
    %v1306 = vadd.f32 %v1198, %v1293
    %v1307 = vld [vmem:[%s10] sm:$0xff]
    %v1308 = vld [vmem:[%s10 + $0x8] sm:$0xff]
    %v1309 = vld [vmem:[%s10 + $0x10] sm:$0xff]
    %v1310 = vld [vmem:[%s10 + $0x18] sm:$0xff]
    %v1311 = vld [vmem:[%s10 + $0x20] sm:$0xff]
    %v1312 = vld [vmem:[%s10 + $0x28] sm:$0xff]
    %1314 = vset.pattern.permute.xlu0 0
    %1315 = vperm.xlu0 %1314, %v1307
    %v1316 = vpop.permute.xlu0 %1315
    %1319 = vset.pattern.permute.xlu0 0
    %1320 = vperm.xlu0 %1319, %v1308
    %v1321 = vpop.permute.xlu0 %1320
    %1324 = vset.pattern.permute.xlu0 0
    %1325 = vperm.xlu0 %1324, %v1309
    %v1326 = vpop.permute.xlu0 %1325
    %1329 = vset.pattern.permute.xlu0 0
    %1330 = vperm.xlu0 %1329, %v1310
    %v1331 = vpop.permute.xlu0 %1330
    %1334 = vset.pattern.permute.xlu0 0
    %1335 = vperm.xlu0 %1334, %v1311
    %v1336 = vpop.permute.xlu0 %1335
    %1339 = vset.pattern.permute.xlu0 0
    %1340 = vperm.xlu0 %1339, %v1312
    %v1341 = vpop.permute.xlu0 %1340
    %v1343 = vadd.f32 %v1295, %v1316
    %v1344 = vadd.f32 %v1296, %v1316
    %v1345 = vadd.f32 %v1297, %v1321
    %v1346 = vadd.f32 %v1298, %v1321
    %v1347 = vadd.f32 %v1299, %v1326
    %v1348 = vadd.f32 %v1300, %v1326
    %v1349 = vadd.f32 %v1301, %v1331
    %v1350 = vadd.f32 %v1302, %v1331
    %v1351 = vadd.f32 %v1303, %v1336
    %v1352 = vadd.f32 %v1304, %v1336
    %v1353 = vadd.f32 %v1305, %v1341
    %v1354 = vadd.f32 %v1306, %v1341
    %v1355 = vadd.f32 %v1343, %v1344
    %1356 = vadd.xlane.f32.xlu0 %v1355
    %v1357 = vpop.xlane.xlu0 %1356
    %v1358 = vadd.f32 %v1345, %v1346
    %1359 = vadd.xlane.f32.xlu0 %v1358
    %v1360 = vpop.xlane.xlu0 %1359
    %v1361 = vadd.f32 %v1347, %v1348
    %1362 = vadd.xlane.f32.xlu0 %v1361
    %v1363 = vpop.xlane.xlu0 %1362
    %v1364 = vadd.f32 %v1349, %v1350
    %1365 = vadd.xlane.f32.xlu0 %v1364
    %v1366 = vpop.xlane.xlu0 %1365
    %v1367 = vadd.f32 %v1351, %v1352
    %1368 = vadd.xlane.f32.xlu0 %v1367
    %v1369 = vpop.xlane.xlu0 %1368
    %v1370 = vadd.f32 %v1353, %v1354
    %1371 = vadd.xlane.f32.xlu0 %v1370
    %v1372 = vpop.xlane.xlu0 %1371
    %v1373 = vmul.f32 %v1343, %v1343
    %v1374 = vmul.f32 %v1344, %v1344
    %v1375 = vmul.f32 %v1345, %v1345
    %v1376 = vmul.f32 %v1346, %v1346
    %v1377 = vmul.f32 %v1347, %v1347
    %v1378 = vmul.f32 %v1348, %v1348
    %v1379 = vmul.f32 %v1349, %v1349
    %v1380 = vmul.f32 %v1350, %v1350
    %v1381 = vmul.f32 %v1351, %v1351
    %v1382 = vmul.f32 %v1352, %v1352
    %v1383 = vmul.f32 %v1353, %v1353
    %v1384 = vmul.f32 %v1354, %v1354
    %v1385 = vadd.f32 %v1373, %v1374
    %1386 = vadd.xlane.f32.xlu0 %v1385
    %v1387 = vpop.xlane.xlu0 %1386
    %v1388 = vadd.f32 %v1375, %v1376
    %1389 = vadd.xlane.f32.xlu0 %v1388
    %v1390 = vpop.xlane.xlu0 %1389
    %v1391 = vadd.f32 %v1377, %v1378
    %1392 = vadd.xlane.f32.xlu0 %v1391
    %v1393 = vpop.xlane.xlu0 %1392
    %v1394 = vadd.f32 %v1379, %v1380
    %1395 = vadd.xlane.f32.xlu0 %v1394
    %v1396 = vpop.xlane.xlu0 %1395
    %v1397 = vadd.f32 %v1381, %v1382
    %1398 = vadd.xlane.f32.xlu0 %v1397
    %v1399 = vpop.xlane.xlu0 %1398
    %v1400 = vadd.f32 %v1383, %v1384
    %1401 = vadd.xlane.f32.xlu0 %v1400
    %v1402 = vpop.xlane.xlu0 %1401
    %v1403 = vmul.f32 %v1357, 0.00390625
    %v1404 = vmul.f32 %v1360, 0.00390625
    %v1405 = vmul.f32 %v1363, 0.00390625
    %v1406 = vmul.f32 %v1366, 0.00390625
    %v1407 = vmul.f32 %v1369, 0.00390625
    %v1408 = vmul.f32 %v1372, 0.00390625
    %v1409 = vmul.f32 %v1387, 0.00390625
    %v1410 = vmul.f32 %v1390, 0.00390625
    %v1411 = vmul.f32 %v1393, 0.00390625
    %v1412 = vmul.f32 %v1396, 0.00390625
    %v1413 = vmul.f32 %v1399, 0.00390625
    %v1414 = vmul.f32 %v1402, 0.00390625
    %v1415 = vmul.f32 %v1403, %v1403
    %v1416 = vmul.f32 %v1404, %v1404
    %v1417 = vmul.f32 %v1405, %v1405
    %v1418 = vmul.f32 %v1406, %v1406
    %v1419 = vmul.f32 %v1407, %v1407
    %v1420 = vmul.f32 %v1408, %v1408
    %v1421 = vsub.f32 %v1409, %v1415
    %v1422 = vsub.f32 %v1410, %v1416
    %v1423 = vsub.f32 %v1411, %v1417
    %v1424 = vsub.f32 %v1412, %v1418
    %v1425 = vsub.f32 %v1413, %v1419
    %v1426 = vsub.f32 %v1414, %v1420
    %v1427 = vmax.f32 %v1421, 0.0
    %v1428 = vmax.f32 %v1422, 0.0
    %v1429 = vmax.f32 %v1423, 0.0
    %v1430 = vmax.f32 %v1424, 0.0
    %v1431 = vmax.f32 %v1425, 0.0
    %v1432 = vmax.f32 %v1426, 0.0
    %v1433 = vld [vmem:[%s11] sm:$0xff]
    %v1434 = vld [vmem:[%s11 + $0x8] sm:$0xff]
    %v1435 = vld [vmem:[%s11 + $0x10] sm:$0xff]
    %v1436 = vld [vmem:[%s11 + $0x18] sm:$0xff]
    %v1437 = vld [vmem:[%s11 + $0x20] sm:$0xff]
    %v1438 = vld [vmem:[%s11 + $0x28] sm:$0xff]
    %v1439 = vadd.f32 %v1427, 1e-05
    %v1440 = vadd.f32 %v1428, 1e-05
    %v1441 = vadd.f32 %v1429, 1e-05
    %v1442 = vadd.f32 %v1430, 1e-05
    %v1443 = vadd.f32 %v1431, 1e-05
    %v1444 = vadd.f32 %v1432, 1e-05
    %v1445 = vrsqrt.pop %v1439
    %v1446 = vmul.f32 %v1445, %v1439
    %v1447 = vmul.f32 %v1446, %v1445
    %v1448 = vmul.f32 0.5, %v1447
    %v1449 = vsub.f32 1.5, %v1448
    %v1450 = vmul.f32 %v1445, %v1449
    %vm1451 = vweird.f32 %v1439
    %vm1452 = vweird.f32 %v1445
    %vm1453 = vmor %vm1451, %vm1452
    %v1454 = vsel %vm1453, %v1445, %v1450
    %v1455 = vrsqrt.pop %v1440
    %v1456 = vmul.f32 %v1455, %v1440
    %v1457 = vmul.f32 %v1456, %v1455
    %v1458 = vmul.f32 0.5, %v1457
    %v1459 = vsub.f32 1.5, %v1458
    %v1460 = vmul.f32 %v1455, %v1459
    %vm1461 = vweird.f32 %v1440
    %vm1462 = vweird.f32 %v1455
    %vm1463 = vmor %vm1461, %vm1462
    %v1464 = vsel %vm1463, %v1455, %v1460
    %v1465 = vrsqrt.pop %v1441
    %v1466 = vmul.f32 %v1465, %v1441
    %v1467 = vmul.f32 %v1466, %v1465
    %v1468 = vmul.f32 0.5, %v1467
    %v1469 = vsub.f32 1.5, %v1468
    %v1470 = vmul.f32 %v1465, %v1469
    %vm1471 = vweird.f32 %v1441
    %vm1472 = vweird.f32 %v1465
    %vm1473 = vmor %vm1471, %vm1472
    %v1474 = vsel %vm1473, %v1465, %v1470
    %v1475 = vrsqrt.pop %v1442
    %v1476 = vmul.f32 %v1475, %v1442
    %v1477 = vmul.f32 %v1476, %v1475
    %v1478 = vmul.f32 0.5, %v1477
    %v1479 = vsub.f32 1.5, %v1478
    %v1480 = vmul.f32 %v1475, %v1479
    %vm1481 = vweird.f32 %v1442
    %vm1482 = vweird.f32 %v1475
    %vm1483 = vmor %vm1481, %vm1482
    %v1484 = vsel %vm1483, %v1475, %v1480
    %v1485 = vrsqrt.pop %v1443
    %v1486 = vmul.f32 %v1485, %v1443
    %v1487 = vmul.f32 %v1486, %v1485
    %v1488 = vmul.f32 0.5, %v1487
    %v1489 = vsub.f32 1.5, %v1488
    %v1490 = vmul.f32 %v1485, %v1489
    %vm1491 = vweird.f32 %v1443
    %vm1492 = vweird.f32 %v1485
    %vm1493 = vmor %vm1491, %vm1492
    %v1494 = vsel %vm1493, %v1485, %v1490
    %v1495 = vrsqrt.pop %v1444
    %v1496 = vmul.f32 %v1495, %v1444
    %v1497 = vmul.f32 %v1496, %v1495
    %v1498 = vmul.f32 0.5, %v1497
    %v1499 = vsub.f32 1.5, %v1498
    %v1500 = vmul.f32 %v1495, %v1499
    %vm1501 = vweird.f32 %v1444
    %vm1502 = vweird.f32 %v1495
    %vm1503 = vmor %vm1501, %vm1502
    %v1504 = vsel %vm1503, %v1495, %v1500
    %v1505 = vmul.f32 %v1433, %v1454
    %v1506 = vmul.f32 %v1434, %v1464
    %v1507 = vmul.f32 %v1435, %v1474
    %v1508 = vmul.f32 %v1436, %v1484
    %v1509 = vmul.f32 %v1437, %v1494
    %v1510 = vmul.f32 %v1438, %v1504
    %v1511 = vld [vmem:[%s12] sm:$0xff]
    %v1512 = vld [vmem:[%s12 + $0x8] sm:$0xff]
    %v1513 = vld [vmem:[%s12 + $0x10] sm:$0xff]
    %v1514 = vld [vmem:[%s12 + $0x18] sm:$0xff]
    %v1515 = vld [vmem:[%s12 + $0x20] sm:$0xff]
    %v1516 = vld [vmem:[%s12 + $0x28] sm:$0xff]
    %v1517 = vmul.f32 %v1403, %v1505
    %v1518 = vmul.f32 %v1404, %v1506
    %v1519 = vmul.f32 %v1405, %v1507
    %v1520 = vmul.f32 %v1406, %v1508
    %v1521 = vmul.f32 %v1407, %v1509
    %v1522 = vmul.f32 %v1408, %v1510
    %v1523 = vsub.f32 %v1511, %v1517
    %v1524 = vsub.f32 %v1512, %v1518
    %v1525 = vsub.f32 %v1513, %v1519
    %v1526 = vsub.f32 %v1514, %v1520
    %v1527 = vsub.f32 %v1515, %v1521
    %v1528 = vsub.f32 %v1516, %v1522
    %1530 = vset.pattern.permute.xlu0 0
    %1531 = vperm.xlu0 %1530, %v1505
    %v1532 = vpop.permute.xlu0 %1531
    %1535 = vset.pattern.permute.xlu0 0
    %1536 = vperm.xlu0 %1535, %v1506
    %v1537 = vpop.permute.xlu0 %1536
    %1540 = vset.pattern.permute.xlu0 0
    %1541 = vperm.xlu0 %1540, %v1507
    %v1542 = vpop.permute.xlu0 %1541
    %1545 = vset.pattern.permute.xlu0 0
    %1546 = vperm.xlu0 %1545, %v1508
    %v1547 = vpop.permute.xlu0 %1546
    %1550 = vset.pattern.permute.xlu0 0
    %1551 = vperm.xlu0 %1550, %v1509
    %v1552 = vpop.permute.xlu0 %1551
    %1555 = vset.pattern.permute.xlu0 0
    %1556 = vperm.xlu0 %1555, %v1510
    %v1557 = vpop.permute.xlu0 %1556
    %v1559 = vmul.f32 %v1343, %v1532
    %v1560 = vmul.f32 %v1344, %v1532
    %v1561 = vmul.f32 %v1345, %v1537
    %v1562 = vmul.f32 %v1346, %v1537
    %v1563 = vmul.f32 %v1347, %v1542
    %v1564 = vmul.f32 %v1348, %v1542
    %v1565 = vmul.f32 %v1349, %v1547
    %v1566 = vmul.f32 %v1350, %v1547
    %v1567 = vmul.f32 %v1351, %v1552
    %v1568 = vmul.f32 %v1352, %v1552
    %v1569 = vmul.f32 %v1353, %v1557
    %v1570 = vmul.f32 %v1354, %v1557
    %1572 = vset.pattern.permute.xlu0 0
    %1573 = vperm.xlu0 %1572, %v1523
    %v1574 = vpop.permute.xlu0 %1573
    %1577 = vset.pattern.permute.xlu0 0
    %1578 = vperm.xlu0 %1577, %v1524
    %v1579 = vpop.permute.xlu0 %1578
    %1582 = vset.pattern.permute.xlu0 0
    %1583 = vperm.xlu0 %1582, %v1525
    %v1584 = vpop.permute.xlu0 %1583
    %1587 = vset.pattern.permute.xlu0 0
    %1588 = vperm.xlu0 %1587, %v1526
    %v1589 = vpop.permute.xlu0 %1588
    %1592 = vset.pattern.permute.xlu0 0
    %1593 = vperm.xlu0 %1592, %v1527
    %v1594 = vpop.permute.xlu0 %1593
    %1597 = vset.pattern.permute.xlu0 0
    %1598 = vperm.xlu0 %1597, %v1528
    %v1599 = vpop.permute.xlu0 %1598
    %v1601 = vadd.f32 %v1559, %v1574
    %v1602 = vadd.f32 %v1560, %v1574
    %v1603 = vadd.f32 %v1561, %v1579
    %v1604 = vadd.f32 %v1562, %v1579
    %v1605 = vadd.f32 %v1563, %v1584
    %v1606 = vadd.f32 %v1564, %v1584
    %v1607 = vadd.f32 %v1565, %v1589
    %v1608 = vadd.f32 %v1566, %v1589
    %v1609 = vadd.f32 %v1567, %v1594
    %v1610 = vadd.f32 %v1568, %v1594
    %v1611 = vadd.f32 %v1569, %v1599
    %v1612 = vadd.f32 %v1570, %v1599
    %v1613 = vmax.f32 %v1601, 0.0
    %v1614 = vmax.f32 %v1602, 0.0
    %v1615 = vmax.f32 %v1603, 0.0
    %v1616 = vmax.f32 %v1604, 0.0
    %v1617 = vmax.f32 %v1605, 0.0
    %v1618 = vmax.f32 %v1606, 0.0
    %v1619 = vmax.f32 %v1607, 0.0
    %v1620 = vmax.f32 %v1608, 0.0
    %v1621 = vmax.f32 %v1609, 0.0
    %v1622 = vmax.f32 %v1610, 0.0
    %v1623 = vmax.f32 %v1611, 0.0
    %v1624 = vmax.f32 %v1612, 0.0
    %1625 = vst [vmem:[#allocation2] sm:$0xff] %v1613
    %1626 = vst [vmem:[#allocation2 + $0x8] sm:$0xff] %v1615
    %1627 = vst [vmem:[#allocation2 + $0x10] sm:$0xff] %v1617
    %1628 = vst [vmem:[#allocation2 + $0x18] sm:$0xff] %v1619
    %1629 = vst [vmem:[#allocation2 + $0x20] sm:$0xff] %v1621
    %1630 = vst [vmem:[#allocation2 + $0x28] sm:$0xff] %v1623
    %s1631 = scalar_lea.vmem [#allocation2], 48
    %1632 = vst [vmem:[%s1631] sm:$0xff] %v1614
    %1633 = vst [vmem:[%s1631 + $0x8] sm:$0xff] %v1616
    %1634 = vst [vmem:[%s1631 + $0x10] sm:$0xff] %v1618
    %1635 = vst [vmem:[%s1631 + $0x18] sm:$0xff] %v1620
    %1636 = vst [vmem:[%s1631 + $0x20] sm:$0xff] %v1622
    %1637 = vst [vmem:[%s1631 + $0x28] sm:$0xff] %v1624
    // Predicated region
    $region54: #{res_block.1} parent=1 // pred_check
      _
    $region55: #{res_block.1} parent=1 // pred_check_branch
      %1639 = sbr.rel (0) target = $region57
    $region56: #{res_block.1} parent=1 // pred_region
      %1641 = vsyncadd [#allocation3], 0
      %s1642 = sshll.u32 [#allocation2], 4
      %s1643 = int_to_ptr.vmem [resolvable:$true] %s1642
      %s1644 = sshll.u32 %s13, 4
      %s1645 = int_to_ptr.hbm [resolvable:$true] %s1644
      %1650 = dma.vmem_to_hbm [thread:$0]  %s1643, 1536, %s1645, [#allocation3], 128, 128, 8
    $region57: #{res_block.1} parent=1 // pred_fallthru
      _
    // Predicated region
    $region58: #{res_block.1} parent=1 // pred_check
      _
    $region59: #{res_block.1} parent=1 // pred_check_branch
      %1652 = sbr.rel (0) target = $region61
    $region60: #{res_block.1} parent=1 // pred_region
      %1654 = dma.done [#allocation3], 1536
    $region61: #{res_block.1} parent=1 // pred_fallthru
      _
    %1655 = vsyncpa [#allocation3], 1

</llo_original>
